<compile_context>
chip_gen: v7x
topology: tpu7x:2x2x1
jax: 0.10.0
libtpu: 0.0.40
codegen_flags: <defaults>
</compile_context>

<pallas_src>
import functools

import jax
import jax.numpy as jnp
from jax.experimental import pallas as pl
from jax.experimental.pallas import tpu as pltpu

NEG_INF = -1e30


def _round_up(x, m):
    return -(-x // m) * m


def _masked_softmax_lastdim(s, mask_row):
    """Masked softmax over the last (lane) axis.

    s: (BB, M, L) f32; mask_row: (BB, 1, L) bool (broadcast over sublanes).
    """
    s = jnp.where(mask_row, s, NEG_INF)
    m = jnp.max(s, axis=-1, keepdims=True)
    e = jnp.exp(s - m)
    denom = jnp.sum(e, axis=-1, keepdims=True)
    return e * pl.reciprocal(denom, approx=True)


def _fuse(a, b, wa, wb, wp, bias2, mm_dtype):
    """Gated fusion without the lane-axis concat.

    Original: x = cat([a, b, a*b, a-b]); m = tanh(x@Wl + bl); g = sigmoid(x@Wg + bg)
    Folded:   x@W = a@(W1+W4) + b@(W2-W4) + (a*b)@W3, lin/gate fused along N.
    a, b: (BB, L, H); wa/wb/wp: (H, 2H) in mm_dtype; bias2: (1, 2H) f32.
    """
    BB, L, H = a.shape
    a2 = a.reshape(BB * L, H)
    b2 = b.reshape(BB * L, H)
    y = (jnp.dot(a2.astype(mm_dtype), wa, preferred_element_type=jnp.float32)
         + jnp.dot(b2.astype(mm_dtype), wb, preferred_element_type=jnp.float32)
         + jnp.dot((a2 * b2).astype(mm_dtype), wp,
                   preferred_element_type=jnp.float32)
         + bias2)
    m = jnp.tanh(y[:, :H])
    g = jax.nn.sigmoid(y[:, H:])
    out = g * m + (1.0 - g) * a2
    return out.reshape(BB, L, H)


def coattention_kernel(c_ref, q_ref, cmask_ref, qmask_ref,
                       cqw_ref, cw_ref, qw_ref,
                       wa_ca_ref, wb_ca_ref, wp_ca_ref, bias_ca_ref,
                       wa_qb_ref, wb_qb_ref, wp_qb_ref, bias_qb_ref,
                       c_out_ref, q_out_ref, *, mm_dtype):
    c = c_ref[...]                        # (BB, CLp, Hp) f32
    q = q_ref[...]                        # (BB, QLp, Hp) f32

    cqw = cqw_ref[...]                    # (1, Hp) f32
    cw = cw_ref[...]                      # (1, Hp) f32
    qw = qw_ref[...]                      # (1, Hp) f32

    # Broadcastable 2D mask rows (no full 3D iota/compare).
    qmask = qmask_ref[...] != 0.0         # (BB, 1, QLp) bool
    cmask = cmask_ref[...] != 0.0         # (BB, 1, CLp) bool

    c_mm = c.astype(mm_dtype)
    q_mm = q.astype(mm_dtype)

    # ---------------- context branch (computed fully before the query branch
    # so the big (BB, CL, QL) temporaries are never simultaneously live) -----
    # TODO(synk): if MLIR shows a per-batch vxpose for the 'h'-contracted
    # einsums, hoist one pltpu.einshape transpose of q_mm/c_mm per block.
    c_aug = (c * cqw + qw).astype(mm_dtype)
    s_a = jnp.einsum('bch,bqh->bcq', c_aug, q_mm,
                     preferred_element_type=jnp.float32)        # (BB, CLp, QLp)
    p1 = _masked_softmax_lastdim(s_a, qmask)                    # (BB, CLp, QLp)
    a = jnp.einsum('bcq,bqh->bch', p1.astype(mm_dtype), q_mm,
                   preferred_element_type=jnp.float32)          # (BB, CLp, Hp)
    c_out_ref[...] = _fuse(c, a, wa_ca_ref[...], wb_ca_ref[...],
                           wp_ca_ref[...], bias_ca_ref[...], mm_dtype)

    # ---------------- query branch ------------------------------------------
    q_aug = (q * cqw + cw).astype(mm_dtype)
    s_b = jnp.einsum('bqh,bch->bqc', q_aug, c_mm,
                     preferred_element_type=jnp.float32)        # (BB, QLp, CLp)
    p2t = _masked_softmax_lastdim(s_b, cmask)                   # (BB, QLp, CLp)
    b = jnp.einsum('bqc,bch->bqh', p2t.astype(mm_dtype), c_mm,
                   preferred_element_type=jnp.float32)          # (BB, QLp, Hp)
    q_out_ref[...] = _fuse(q, b, wa_qb_ref[...], wb_qb_ref[...],
                           wp_qb_ref[...], bias_qb_ref[...], mm_dtype)


def coattention(c, q, c_mask, q_mask, params, *, block_b=8,
                mm_dtype=jnp.bfloat16, vmem_limit_bytes=None):
    """c: (B, CL, H), q: (B, QL, H), c_mask: (B, CL), q_mask: (B, QL).

    Masks are arbitrary binary padding masks (1 = valid, 0 = pad).
    mm_dtype controls MXU-operand precision (accumulation stays f32).
    """
    B, CL, H = c.shape
    QL = q.shape[1]
    (c_weight, q_weight, cq_weight, bias,
     lin_ca_w, lin_ca_b, gate_ca_w, gate_ca_b,
     lin_qb_w, lin_qb_b, gate_qb_w, gate_qb_b) = params

    # `bias` is an additive constant on the similarity logits; it cancels in
    # both masked softmaxes (shift invariance), so it never affects the output.
    del bias

    # ---- padded sizes for lane/sublane density -----------------------------
    Hp = _round_up(H, 128)
    CLp = _round_up(CL, 8)
    QLp = _round_up(QL, 8)

    # ---- VMEM budget / block_b ---------------------------------------------
    if vmem_limit_bytes is None:
        try:
            info = pltpu.get_tpu_info()
            phys = getattr(info, "vmem_capacity_bytes", 128 * 1024 * 1024)
        except Exception:
            phys = 128 * 1024 * 1024
        vmem_limit_bytes = int(phys) * 3 // 4          # ~96 MiB v5e/v6e, ~48 MiB v7x

    # Rough per-batch-element footprint (f32): double-buffered c/q in + out,
    # plus the worst single branch's temporaries (s, p, exp, attended, fuse).
    per_elem = 4 * (4 * (CLp + QLp) * Hp
                    + 3 * CLp * QLp
                    + 4 * max(CLp, QLp) * Hp)
    bb_fit = max(1, (vmem_limit_bytes // 2) // max(per_elem, 1))
    BB = max(1, min(block_b, B, bb_fit))
    # Force >= 2 grid steps when possible so the "parallel" axis can split
    # across v7x's two TensorCores.
    if B >= 2 and -(-B // BB) < 2:
        BB = -(-B // 2)
    Bp = _round_up(B, BB)

    # ---- weight folding / padding ------------------------------------------
    def pad_row(v):          # (1, H) -> (1, Hp)
        return jnp.pad(v, ((0, 0), (0, Hp - H)))

    cw_row = pad_row(c_weight.reshape(1, H).astype(jnp.float32))
    qw_row = pad_row(q_weight.reshape(1, H).astype(jnp.float32))
    cqw_row = pad_row(cq_weight.reshape(1, H).astype(jnp.float32))

    def fold_fuse(lin_w, lin_b, gate_w, gate_b):
        # x = [a, b, a*b, a-b] @ W  ==  a@(W1+W4) + b@(W2-W4) + (a*b)@W3,
        # linear/gate fused along the output axis; padded to (Hp, 2Hp).
        def split(w):
            return w[:H], w[H:2 * H], w[2 * H:3 * H], w[3 * H:]
        l1, l2, l3, l4 = split(lin_w)
        g1, g2, g3, g4 = split(gate_w)

        def padHH(w):        # (H, H) -> (Hp, Hp), zero pad
            return jnp.pad(w, ((0, Hp - H), (0, Hp - H)))

        wa = jnp.concatenate([padHH(l1 + l4), padHH(g1 + g4)], axis=1)
        wb = jnp.concatenate([padHH(l2 - l4), padHH(g2 - g4)], axis=1)
        wp = jnp.concatenate([padHH(l3), padHH(g3)], axis=1)
        bcat = jnp.concatenate([pad_row(lin_b), pad_row(gate_b)], axis=1)
        return (wa.astype(mm_dtype), wb.astype(mm_dtype),
                wp.astype(mm_dtype), bcat.astype(jnp.float32))

    wa_ca, wb_ca, wp_ca, bias_ca = fold_fuse(lin_ca_w, lin_ca_b,
                                             gate_ca_w, gate_ca_b)
    wa_qb, wb_qb, wp_qb, bias_qb = fold_fuse(lin_qb_w, lin_qb_b,
                                             gate_qb_w, gate_qb_b)

    # ---- data / mask padding (padded tokens are masked out in-kernel) ------
    c_p = jnp.pad(c.astype(jnp.float32),
                  ((0, Bp - B), (0, CLp - CL), (0, Hp - H)))
    q_p = jnp.pad(q.astype(jnp.float32),
                  ((0, Bp - B), (0, QLp - QL), (0, Hp - H)))
    cmask_row = jnp.pad(c_mask.astype(jnp.float32).reshape(B, 1, CL),
                        ((0, Bp - B), (0, 0), (0, CLp - CL)))
    qmask_row = jnp.pad(q_mask.astype(jnp.float32).reshape(B, 1, QL),
                        ((0, Bp - B), (0, 0), (0, QLp - QL)))

    grid = (Bp // BB,)

    def per_batch(shape):
        return pl.BlockSpec(shape, lambda i: (i, 0, 0))

    # Grid-constant weights: whole operand resident in VMEM (single copy,
    # no per-step DMA, no double-buffering).
    vmem_resident = pl.BlockSpec(memory_space=pltpu.MemorySpace.VMEM)

    in_specs = [
        per_batch((BB, CLp, Hp)),      # c
        per_batch((BB, QLp, Hp)),      # q
        per_batch((BB, 1, CLp)),       # c mask row
        per_batch((BB, 1, QLp)),       # q mask row
        vmem_resident, vmem_resident, vmem_resident,        # cqw, cw, qw
        vmem_resident, vmem_resident, vmem_resident, vmem_resident,  # fuse_ca
        vmem_resident, vmem_resident, vmem_resident, vmem_resident,  # fuse_qb
    ]
    out_specs = [per_batch((BB, CLp, Hp)), per_batch((BB, QLp, Hp))]
    out_shape = [jax.ShapeDtypeStruct((Bp, CLp, Hp), jnp.float32),
                 jax.ShapeDtypeStruct((Bp, QLp, Hp), jnp.float32)]

    kernel = functools.partial(coattention_kernel, mm_dtype=mm_dtype)

    fn = pl.pallas_call(
        kernel,
        grid=grid,
        in_specs=in_specs,
        out_specs=out_specs,
        out_shape=out_shape,
        compiler_params=pltpu.CompilerParams(
            dimension_semantics=("parallel",),
            vmem_limit_bytes=int(vmem_limit_bytes),
        ),
    )
    c_co, q_co = fn(c_p, q_p, cmask_row, qmask_row,
                    cqw_row, cw_row, qw_row,
                    wa_ca, wb_ca, wp_ca, bias_ca,
                    wa_qb, wb_qb, wp_qb, bias_qb)
    return c_co[:B, :CL, :H], q_co[:B, :QL, :H]


def init_params(key, hidden_size):
    H = hidden_size
    ks = jax.random.split(key, 16)

    def xavier(k, shape, fan_in, fan_out):
        bound = (6.0 / (fan_in + fan_out)) ** 0.5
        return jax.random.uniform(k, shape, jnp.float32, -bound, bound)

    def linear_wb(kw, kb, in_f, out_f):
        # PyTorch Linear default init; weight stored transposed as (in_f, out_f)
        bound = 1.0 / (in_f ** 0.5)
        w = jax.random.uniform(kw, (in_f, out_f), jnp.float32, -bound, bound)
        b = jax.random.uniform(kb, (1, out_f), jnp.float32, -bound, bound)
        return w, b

    c_weight = xavier(ks[0], (H, 1), 1, H)
    q_weight = xavier(ks[1], (H, 1), 1, H)
    cq_weight = xavier(ks[2], (1, H), H, 1)     # (1,1,H) squeezed
    bias = jnp.zeros((1, 1), jnp.float32)       # nn.Parameter(torch.zeros(1))

    lin_ca_w, lin_ca_b = linear_wb(ks[3], ks[4], 4 * H, H)
    gate_ca_w, gate_ca_b = linear_wb(ks[5], ks[6], 4 * H, H)
    lin_qb_w, lin_qb_b = linear_wb(ks[7], ks[8], 4 * H, H)
    gate_qb_w, gate_qb_b = linear_wb(ks[9], ks[10], 4 * H, H)

    return (c_weight, q_weight, cq_weight, bias,
            lin_ca_w, lin_ca_b, gate_ca_w, gate_ca_b,
            lin_qb_w, lin_qb_b, gate_qb_w, gate_qb_b)


def reference_coattention(c, q, c_mask, q_mask, params):
    """Pure-JAX reference following the original PyTorch formulation exactly."""
    (c_weight, q_weight, cq_weight, bias,
     lin_ca_w, lin_ca_b, gate_ca_w, gate_ca_b,
     lin_qb_w, lin_qb_b, gate_qb_w, gate_qb_b) = params
    B, CL, H = c.shape
    QL = q.shape[1]
    s0 = jnp.einsum('bch,ho->bco', c, c_weight)                       # (B,CL,1)
    s1 = jnp.einsum('bqh,ho->bqo', q, q_weight)                       # (B,QL,1)
    s2 = jnp.einsum('bch,bqh->bcq', c * cq_weight.reshape(1, 1, H), q)
    s = s0 + jnp.swapaxes(s1, 1, 2) + s2 + bias.reshape(())           # (B,CL,QL)
    cm = c_mask.astype(jnp.float32).reshape(B, CL, 1)
    qm = q_mask.astype(jnp.float32).reshape(B, 1, QL)
    p1 = jax.nn.softmax(qm * s + (1.0 - qm) * NEG_INF, axis=2)
    p2 = jax.nn.softmax(cm * s + (1.0 - cm) * NEG_INF, axis=1)
    a = jnp.einsum('bcq,bqh->bch', p1, q)
    b = jnp.einsum('bcq,bch->bqh', p2, c)

    def fuse(a_, b_, lw, lb, gw, gb):
        x = jnp.concatenate([a_, b_, a_ * b_, a_ - b_], axis=-1)
        m = jnp.tanh(x @ lw + lb)
        g = jax.nn.sigmoid(x @ gw + gb)
        return g * m + (1 - g) * a_

    return (fuse(c, a, lin_ca_w, lin_ca_b, gate_ca_w, gate_ca_b),
            fuse(q, b, lin_qb_w, lin_qb_b, gate_qb_w, gate_qb_b))


if __name__ == "__main__":
    B, CL, QL, H = 2, 16, 8, 32
    key = jax.random.PRNGKey(0)
    k_c, k_q, k_p = jax.random.split(key, 3)

    c = jax.random.normal(k_c, (B, CL, H), jnp.float32)
    q = jax.random.normal(k_q, (B, QL, H), jnp.float32)

    # deterministic padding masks (1 = valid token, 0 = pad)
    c_lens = jnp.array([CL, 12])
    q_lens = jnp.array([QL, 5])
    c_mask = (jnp.arange(CL)[None, :] < c_lens[:, None]).astype(jnp.float32)
    q_mask = (jnp.arange(QL)[None, :] < q_lens[:, None]).astype(jnp.float32)

    params = init_params(k_p, H)

    c_coatt, q_coatt = coattention(c, q, c_mask, q_mask, params)
    jax.block_until_ready((c_coatt, q_coatt))
    assert c_coatt.shape == (B, CL, H) and q_coatt.shape == (B, QL, H)

    # correctness check against the straight (un-folded) formulation
    c_ref, q_ref = reference_coattention(c, q, c_mask, q_mask, params)
    assert bool(jnp.allclose(c_coatt, c_ref, atol=5e-2, rtol=5e-2))
    assert bool(jnp.allclose(q_coatt, q_ref, atol=5e-2, rtol=5e-2))

    print("KERNEL_OK")
</pallas_src>

<mosaic_0001>
module attributes {stable_mosaic.version = 11 : i64} {
  func.func @coattention_kernel(%arg0: i32, %arg1: memref<1x16x128xf32, #tpu.memory_space<vmem>>, %arg2: memref<1x8x128xf32, #tpu.memory_space<vmem>>, %arg3: memref<1x1x16xf32, #tpu.memory_space<vmem>>, %arg4: memref<1x1x8xf32, #tpu.memory_space<vmem>>, %arg5: memref<1x128xf32, #tpu.memory_space<vmem>>, %arg6: memref<1x128xf32, #tpu.memory_space<vmem>>, %arg7: memref<1x128xf32, #tpu.memory_space<vmem>>, %arg8: memref<128x256xbf16, #tpu.memory_space<vmem>>, %arg9: memref<128x256xbf16, #tpu.memory_space<vmem>>, %arg10: memref<128x256xbf16, #tpu.memory_space<vmem>>, %arg11: memref<1x256xf32, #tpu.memory_space<vmem>>, %arg12: memref<128x256xbf16, #tpu.memory_space<vmem>>, %arg13: memref<128x256xbf16, #tpu.memory_space<vmem>>, %arg14: memref<128x256xbf16, #tpu.memory_space<vmem>>, %arg15: memref<1x256xf32, #tpu.memory_space<vmem>>, %arg16: memref<1x16x128xf32, #tpu.memory_space<vmem>>, %arg17: memref<1x8x128xf32, #tpu.memory_space<vmem>>) attributes {dimension_semantics = [#tpu.dimension_semantics<parallel>], iteration_bounds = array<i64: 2>, scalar_prefetch = 0 : i64, scratch_operands = 0 : i64, tpu.core_type = #tpu.core_type<tc>, window_params = [{transform_indices = @transform_0, window_bounds = array<i64: 1, 16, 128>}, {transform_indices = @transform_1, window_bounds = array<i64: 1, 8, 128>}, {transform_indices = @transform_2, window_bounds = array<i64: 1, 1, 16>}, {transform_indices = @transform_3, window_bounds = array<i64: 1, 1, 8>}, {pipeline_mode = #tpu.pipeline_mode<synchronous>, transform_indices = @transform_4, window_bounds = array<i64: 1, 128>}, {pipeline_mode = #tpu.pipeline_mode<synchronous>, transform_indices = @transform_5, window_bounds = array<i64: 1, 128>}, {pipeline_mode = #tpu.pipeline_mode<synchronous>, transform_indices = @transform_6, window_bounds = array<i64: 1, 128>}, {pipeline_mode = #tpu.pipeline_mode<synchronous>, transform_indices = @transform_7, window_bounds = array<i64: 128, 256>}, {pipeline_mode = #tpu.pipeline_mode<synchronous>, transform_indices = @transform_8, window_bounds = array<i64: 128, 256>}, {pipeline_mode = #tpu.pipeline_mode<synchronous>, transform_indices = @transform_9, window_bounds = array<i64: 128, 256>}, {pipeline_mode = #tpu.pipeline_mode<synchronous>, transform_indices = @transform_10, window_bounds = array<i64: 1, 256>}, {pipeline_mode = #tpu.pipeline_mode<synchronous>, transform_indices = @transform_11, window_bounds = array<i64: 128, 256>}, {pipeline_mode = #tpu.pipeline_mode<synchronous>, transform_indices = @transform_12, window_bounds = array<i64: 128, 256>}, {pipeline_mode = #tpu.pipeline_mode<synchronous>, transform_indices = @transform_13, window_bounds = array<i64: 128, 256>}, {pipeline_mode = #tpu.pipeline_mode<synchronous>, transform_indices = @transform_14, window_bounds = array<i64: 1, 256>}, {transform_indices = @transform_15, window_bounds = array<i64: 1, 16, 128>}, {transform_indices = @transform_16, window_bounds = array<i64: 1, 8, 128>}]} {
    %c0 = arith.constant 0 : index
    %c0_0 = arith.constant 0 : index
    %c0_1 = arith.constant 0 : index
    %0 = vector.load %arg1[%c0, %c0_0, %c0_1] : memref<1x16x128xf32, #tpu.memory_space<vmem>>, vector<1x16x128xf32>
    %c0_2 = arith.constant 0 : index
    %c0_3 = arith.constant 0 : index
    %c0_4 = arith.constant 0 : index
    %1 = vector.load %arg2[%c0_2, %c0_3, %c0_4] : memref<1x8x128xf32, #tpu.memory_space<vmem>>, vector<1x8x128xf32>
    %c0_5 = arith.constant 0 : index
    %c0_6 = arith.constant 0 : index
    %2 = vector.load %arg5[%c0_5, %c0_6] : memref<1x128xf32, #tpu.memory_space<vmem>>, vector<1x128xf32>
    %c0_7 = arith.constant 0 : index
    %c0_8 = arith.constant 0 : index
    %3 = vector.load %arg6[%c0_7, %c0_8] : memref<1x128xf32, #tpu.memory_space<vmem>>, vector<1x128xf32>
    %c0_9 = arith.constant 0 : index
    %c0_10 = arith.constant 0 : index
    %4 = vector.load %arg7[%c0_9, %c0_10] : memref<1x128xf32, #tpu.memory_space<vmem>>, vector<1x128xf32>
    %c0_11 = arith.constant 0 : index
    %c0_12 = arith.constant 0 : index
    %c0_13 = arith.constant 0 : index
    %5 = vector.load %arg4[%c0_11, %c0_12, %c0_13] : memref<1x1x8xf32, #tpu.memory_space<vmem>>, vector<1x1x8xf32>
    %cst = arith.constant 0.000000e+00 : f32
    %6 = vector.broadcast %cst : f32 to vector<1x1x8xf32>
    %7 = arith.cmpf one, %5, %6 : vector<1x1x8xf32>
    %c0_14 = arith.constant 0 : index
    %c0_15 = arith.constant 0 : index
    %c0_16 = arith.constant 0 : index
    %8 = vector.load %arg3[%c0_14, %c0_15, %c0_16] : memref<1x1x16xf32, #tpu.memory_space<vmem>>, vector<1x1x16xf32>
    %cst_17 = arith.constant 0.000000e+00 : f32
    %9 = vector.broadcast %cst_17 : f32 to vector<1x1x16xf32>
    %10 = arith.cmpf one, %8, %9 : vector<1x1x16xf32>
    %11 = arith.truncf %0 : vector<1x16x128xf32> to vector<1x16x128xbf16>
    %12 = arith.truncf %1 : vector<1x8x128xf32> to vector<1x8x128xbf16>
    %13 = vector.shape_cast %2 : vector<1x128xf32> to vector<1x1x128xf32>
    %14 = vector.broadcast %13 : vector<1x1x128xf32> to vector<1x16x128xf32>
    %15 = arith.mulf %0, %14 : vector<1x16x128xf32>
    %16 = vector.shape_cast %4 : vector<1x128xf32> to vector<1x1x128xf32>
    %17 = vector.broadcast %16 : vector<1x1x128xf32> to vector<1x16x128xf32>
    %18 = arith.addf %15, %17 : vector<1x16x128xf32>
    %19 = arith.truncf %18 : vector<1x16x128xf32> to vector<1x16x128xbf16>
    "tpu.trace_start"() <{level = 10 : i32, message = "bch,bqh->bcq"}> : () -> ()
    %cst_18 = arith.constant dense<0.000000e+00> : vector<1x16x8xf32>
    %20 = tpu.matmul %19, %12, %cst_18 {dimension_numbers = #tpu.dot_dimension_numbers<[2], [2], [1], [1], [0, 0, 0, 1, 1, 1], [0], [0]>} : vector<1x16x128xbf16>, vector<1x8x128xbf16>, vector<1x16x8xf32> -> vector<1x16x8xf32>
    %cst_19 = arith.constant -1.000000e+30 : f32
    "tpu.trace_stop"() : () -> ()
    %21 = vector.shape_cast %7 : vector<1x1x8xi1> to vector<1x1x8xi1>
    %22 = vector.broadcast %21 : vector<1x1x8xi1> to vector<1x16x8xi1>
    %23 = vector.broadcast %cst_19 : f32 to vector<1x16x8xf32>
    %24 = arith.select %22, %20, %23 : vector<1x16x8xi1>, vector<1x16x8xf32>
    %cst_20 = arith.constant dense<0xFF800000> : vector<1x16xf32>
    %25 = vector.multi_reduction <maximumf>, %24, %cst_20 [2] : vector<1x16x8xf32> to vector<1x16xf32>
    %26 = vector.shape_cast %25 : vector<1x16xf32> to vector<1x16x1xf32>
    %27 = vector.broadcast %26 : vector<1x16x1xf32> to vector<1x16x8xf32>
    %28 = arith.subf %24, %27 : vector<1x16x8xf32>
    %29 = math.exp %28 : vector<1x16x8xf32>
    %cst_21 = arith.constant dense<0.000000e+00> : vector<1x16xf32>
    %30 = vector.multi_reduction <add>, %29, %cst_21 [2] : vector<1x16x8xf32> to vector<1x16xf32>
    %31 = vector.shape_cast %30 : vector<1x16xf32> to vector<1x16x1xf32>
    %32 = tpu.reciprocal %31 {approx = true} : vector<1x16x1xf32> -> vector<1x16x1xf32>
    %33 = vector.broadcast %32 : vector<1x16x1xf32> to vector<1x16x8xf32>
    %34 = arith.mulf %29, %33 : vector<1x16x8xf32>
    %35 = arith.truncf %34 : vector<1x16x8xf32> to vector<1x16x8xbf16>
    "tpu.trace_start"() <{level = 10 : i32, message = "bcq,bqh->bch"}> : () -> ()
    %cst_22 = arith.constant dense<0.000000e+00> : vector<1x16x128xf32>
    %36 = tpu.matmul %35, %12, %cst_22 {dimension_numbers = #tpu.dot_dimension_numbers<[2], [1], [1], [2], [0, 0, 0, 1, 1, 2], [0], [0]>} : vector<1x16x8xbf16>, vector<1x8x128xbf16>, vector<1x16x128xf32> -> vector<1x16x128xf32>
    "tpu.trace_stop"() : () -> ()
    %c0_23 = arith.constant 0 : index
    %c0_24 = arith.constant 0 : index
    %37 = vector.load %arg8[%c0_23, %c0_24] : memref<128x256xbf16, #tpu.memory_space<vmem>>, vector<128x256xbf16>
    %c0_25 = arith.constant 0 : index
    %c0_26 = arith.constant 0 : index
    %38 = vector.load %arg9[%c0_25, %c0_26] : memref<128x256xbf16, #tpu.memory_space<vmem>>, vector<128x256xbf16>
    %c0_27 = arith.constant 0 : index
    %c0_28 = arith.constant 0 : index
    %39 = vector.load %arg10[%c0_27, %c0_28] : memref<128x256xbf16, #tpu.memory_space<vmem>>, vector<128x256xbf16>
    %c0_29 = arith.constant 0 : index
    %c0_30 = arith.constant 0 : index
    %40 = vector.load %arg11[%c0_29, %c0_30] : memref<1x256xf32, #tpu.memory_space<vmem>>, vector<1x256xf32>
    %41 = vector.shape_cast %0 : vector<1x16x128xf32> to vector<16x128xf32>
    %42 = vector.shape_cast %36 : vector<1x16x128xf32> to vector<16x128xf32>
    %43 = arith.truncf %41 : vector<16x128xf32> to vector<16x128xbf16>
    %cst_31 = arith.constant dense<0.000000e+00> : vector<16x256xf32>
    %44 = tpu.matmul %43, %37, %cst_31 {dimension_numbers = #tpu.dot_dimension_numbers<[1], [0], [0], [1], [0, 0, 1, 1], [], []>} : vector<16x128xbf16>, vector<128x256xbf16>, vector<16x256xf32> -> vector<16x256xf32>
    %45 = arith.truncf %42 : vector<16x128xf32> to vector<16x128xbf16>
    %cst_32 = arith.constant dense<0.000000e+00> : vector<16x256xf32>
    %46 = tpu.matmul %45, %38, %cst_32 {dimension_numbers = #tpu.dot_dimension_numbers<[1], [0], [0], [1], [0, 0, 1, 1], [], []>} : vector<16x128xbf16>, vector<128x256xbf16>, vector<16x256xf32> -> vector<16x256xf32>
    %47 = arith.addf %44, %46 : vector<16x256xf32>
    %48 = arith.mulf %41, %42 : vector<16x128xf32>
    %49 = arith.truncf %48 : vector<16x128xf32> to vector<16x128xbf16>
    %cst_33 = arith.constant dense<0.000000e+00> : vector<16x256xf32>
    %50 = tpu.matmul %49, %39, %cst_33 {dimension_numbers = #tpu.dot_dimension_numbers<[1], [0], [0], [1], [0, 0, 1, 1], [], []>} : vector<16x128xbf16>, vector<128x256xbf16>, vector<16x256xf32> -> vector<16x256xf32>
    %51 = arith.addf %47, %50 : vector<16x256xf32>
    %52 = vector.broadcast %40 : vector<1x256xf32> to vector<16x256xf32>
    %53 = arith.addf %51, %52 : vector<16x256xf32>
    %54 = vector.extract_strided_slice %53 {offsets = [0, 0], sizes = [16, 128], strides = [1, 1]} : vector<16x256xf32> to vector<16x128xf32>
    %55 = math.tanh %54 : vector<16x128xf32>
    %56 = vector.extract_strided_slice %53 {offsets = [0, 128], sizes = [16, 128], strides = [1, 1]} : vector<16x256xf32> to vector<16x128xf32>
    %57 = arith.negf %56 : vector<16x128xf32>
    %58 = math.exp %57 : vector<16x128xf32>
    %cst_34 = arith.constant 1.000000e+00 : f32
    %59 = vector.broadcast %cst_34 : f32 to vector<16x128xf32>
    %60 = arith.addf %59, %58 : vector<16x128xf32>
    %61 = arith.divf %59, %60 : vector<16x128xf32>
    %62 = arith.mulf %61, %55 : vector<16x128xf32>
    %cst_35 = arith.constant 1.000000e+00 : f32
    %63 = vector.broadcast %cst_35 : f32 to vector<16x128xf32>
    %64 = arith.subf %63, %61 : vector<16x128xf32>
    %65 = arith.mulf %64, %41 : vector<16x128xf32>
    %66 = arith.addf %62, %65 : vector<16x128xf32>
    %67 = vector.shape_cast %66 : vector<16x128xf32> to vector<1x16x128xf32>
    %c0_36 = arith.constant 0 : index
    %c0_37 = arith.constant 0 : index
    %c0_38 = arith.constant 0 : index
    %68 = vector.load %arg16[%c0_36, %c0_37, %c0_38] : memref<1x16x128xf32, #tpu.memory_space<vmem>>, vector<1x16x128xf32>
    tpu.vector_store %arg16[%c0_36, %c0_37, %c0_38], %67 {strides = array<i32>} : memref<1x16x128xf32, #tpu.memory_space<vmem>>, vector<1x16x128xf32>,
    %69 = vector.shape_cast %2 : vector<1x128xf32> to vector<1x1x128xf32>
    %70 = vector.broadcast %69 : vector<1x1x128xf32> to vector<1x8x128xf32>
    %71 = arith.mulf %1, %70 : vector<1x8x128xf32>
    %72 = vector.shape_cast %3 : vector<1x128xf32> to vector<1x1x128xf32>
    %73 = vector.broadcast %72 : vector<1x1x128xf32> to vector<1x8x128xf32>
    %74 = arith.addf %71, %73 : vector<1x8x128xf32>
    %75 = arith.truncf %74 : vector<1x8x128xf32> to vector<1x8x128xbf16>
    "tpu.trace_start"() <{level = 10 : i32, message = "bqh,bch->bqc"}> : () -> ()
    %cst_39 = arith.constant dense<0.000000e+00> : vector<1x8x16xf32>
    %76 = tpu.matmul %75, %11, %cst_39 {dimension_numbers = #tpu.dot_dimension_numbers<[2], [2], [1], [1], [0, 0, 0, 1, 1, 1], [0], [0]>} : vector<1x8x128xbf16>, vector<1x16x128xbf16>, vector<1x8x16xf32> -> vector<1x8x16xf32>
    %cst_40 = arith.constant -1.000000e+30 : f32
    "tpu.trace_stop"() : () -> ()
    %77 = vector.shape_cast %10 : vector<1x1x16xi1> to vector<1x1x16xi1>
    %78 = vector.broadcast %77 : vector<1x1x16xi1> to vector<1x8x16xi1>
    %79 = vector.broadcast %cst_40 : f32 to vector<1x8x16xf32>
    %80 = arith.select %78, %76, %79 : vector<1x8x16xi1>, vector<1x8x16xf32>
    %cst_41 = arith.constant dense<0xFF800000> : vector<1x8xf32>
    %81 = vector.multi_reduction <maximumf>, %80, %cst_41 [2] : vector<1x8x16xf32> to vector<1x8xf32>
    %82 = vector.shape_cast %81 : vector<1x8xf32> to vector<1x8x1xf32>
    %83 = vector.broadcast %82 : vector<1x8x1xf32> to vector<1x8x16xf32>
    %84 = arith.subf %80, %83 : vector<1x8x16xf32>
    %85 = math.exp %84 : vector<1x8x16xf32>
    %cst_42 = arith.constant dense<0.000000e+00> : vector<1x8xf32>
    %86 = vector.multi_reduction <add>, %85, %cst_42 [2] : vector<1x8x16xf32> to vector<1x8xf32>
    %87 = vector.shape_cast %86 : vector<1x8xf32> to vector<1x8x1xf32>
    %88 = tpu.reciprocal %87 {approx = true} : vector<1x8x1xf32> -> vector<1x8x1xf32>
    %89 = vector.broadcast %88 : vector<1x8x1xf32> to vector<1x8x16xf32>
    %90 = arith.mulf %85, %89 : vector<1x8x16xf32>
    %91 = arith.truncf %90 : vector<1x8x16xf32> to vector<1x8x16xbf16>
    "tpu.trace_start"() <{level = 10 : i32, message = "bqc,bch->bqh"}> : () -> ()
    %cst_43 = arith.constant dense<0.000000e+00> : vector<1x8x128xf32>
    %92 = tpu.matmul %91, %11, %cst_43 {dimension_numbers = #tpu.dot_dimension_numbers<[2], [1], [1], [2], [0, 0, 0, 1, 1, 2], [0], [0]>} : vector<1x8x16xbf16>, vector<1x16x128xbf16>, vector<1x8x128xf32> -> vector<1x8x128xf32>
    "tpu.trace_stop"() : () -> ()
    %c0_44 = arith.constant 0 : index
    %c0_45 = arith.constant 0 : index
    %93 = vector.load %arg12[%c0_44, %c0_45] : memref<128x256xbf16, #tpu.memory_space<vmem>>, vector<128x256xbf16>
    %c0_46 = arith.constant 0 : index
    %c0_47 = arith.constant 0 : index
    %94 = vector.load %arg13[%c0_46, %c0_47] : memref<128x256xbf16, #tpu.memory_space<vmem>>, vector<128x256xbf16>
    %c0_48 = arith.constant 0 : index
    %c0_49 = arith.constant 0 : index
    %95 = vector.load %arg14[%c0_48, %c0_49] : memref<128x256xbf16, #tpu.memory_space<vmem>>, vector<128x256xbf16>
    %c0_50 = arith.constant 0 : index
    %c0_51 = arith.constant 0 : index
    %96 = vector.load %arg15[%c0_50, %c0_51] : memref<1x256xf32, #tpu.memory_space<vmem>>, vector<1x256xf32>
    %97 = vector.shape_cast %1 : vector<1x8x128xf32> to vector<8x128xf32>
    %98 = vector.shape_cast %92 : vector<1x8x128xf32> to vector<8x128xf32>
    %99 = arith.truncf %97 : vector<8x128xf32> to vector<8x128xbf16>
    %cst_52 = arith.constant dense<0.000000e+00> : vector<8x256xf32>
    %100 = tpu.matmul %99, %93, %cst_52 {dimension_numbers = #tpu.dot_dimension_numbers<[1], [0], [0], [1], [0, 0, 1, 1], [], []>} : vector<8x128xbf16>, vector<128x256xbf16>, vector<8x256xf32> -> vector<8x256xf32>
    %101 = arith.truncf %98 : vector<8x128xf32> to vector<8x128xbf16>
    %cst_53 = arith.constant dense<0.000000e+00> : vector<8x256xf32>
    %102 = tpu.matmul %101, %94, %cst_53 {dimension_numbers = #tpu.dot_dimension_numbers<[1], [0], [0], [1], [0, 0, 1, 1], [], []>} : vector<8x128xbf16>, vector<128x256xbf16>, vector<8x256xf32> -> vector<8x256xf32>
    %103 = arith.addf %100, %102 : vector<8x256xf32>
    %104 = arith.mulf %97, %98 : vector<8x128xf32>
    %105 = arith.truncf %104 : vector<8x128xf32> to vector<8x128xbf16>
    %cst_54 = arith.constant dense<0.000000e+00> : vector<8x256xf32>
    %106 = tpu.matmul %105, %95, %cst_54 {dimension_numbers = #tpu.dot_dimension_numbers<[1], [0], [0], [1], [0, 0, 1, 1], [], []>} : vector<8x128xbf16>, vector<128x256xbf16>, vector<8x256xf32> -> vector<8x256xf32>
    %107 = arith.addf %103, %106 : vector<8x256xf32>
    %108 = vector.broadcast %96 : vector<1x256xf32> to vector<8x256xf32>
    %109 = arith.addf %107, %108 : vector<8x256xf32>
    %110 = vector.extract_strided_slice %109 {offsets = [0, 0], sizes = [8, 128], strides = [1, 1]} : vector<8x256xf32> to vector<8x128xf32>
    %111 = math.tanh %110 : vector<8x128xf32>
    %112 = vector.extract_strided_slice %109 {offsets = [0, 128], sizes = [8, 128], strides = [1, 1]} : vector<8x256xf32> to vector<8x128xf32>
    %113 = arith.negf %112 : vector<8x128xf32>
    %114 = math.exp %113 : vector<8x128xf32>
    %cst_55 = arith.constant 1.000000e+00 : f32
    %115 = vector.broadcast %cst_55 : f32 to vector<8x128xf32>
    %116 = arith.addf %115, %114 : vector<8x128xf32>
    %117 = arith.divf %115, %116 : vector<8x128xf32>
    %118 = arith.mulf %117, %111 : vector<8x128xf32>
    %cst_56 = arith.constant 1.000000e+00 : f32
    %119 = vector.broadcast %cst_56 : f32 to vector<8x128xf32>
    %120 = arith.subf %119, %117 : vector<8x128xf32>
    %121 = arith.mulf %120, %97 : vector<8x128xf32>
    %122 = arith.addf %118, %121 : vector<8x128xf32>
    %123 = vector.shape_cast %122 : vector<8x128xf32> to vector<1x8x128xf32>
    %c0_57 = arith.constant 0 : index
    %c0_58 = arith.constant 0 : index
    %c0_59 = arith.constant 0 : index
    %124 = vector.load %arg17[%c0_57, %c0_58, %c0_59] : memref<1x8x128xf32, #tpu.memory_space<vmem>>, vector<1x8x128xf32>
    tpu.vector_store %arg17[%c0_57, %c0_58, %c0_59], %123 {strides = array<i32>} : memref<1x8x128xf32, #tpu.memory_space<vmem>>, vector<1x8x128xf32>,
    return
  }
  func.func @transform_0(%arg0: i32) -> (i32, i32, i32) {
    %c0_i32 = arith.constant 0 : i32
    %c0_i32_0 = arith.constant 0 : i32
    %c0_i32_1 = arith.constant 0 : i32
    return %arg0, %c0_i32, %c0_i32_0 : i32, i32, i32
  }
  func.func @transform_1(%arg0: i32) -> (i32, i32, i32) {
    %c0_i32 = arith.constant 0 : i32
    %c0_i32_0 = arith.constant 0 : i32
    %c0_i32_1 = arith.constant 0 : i32
    return %arg0, %c0_i32, %c0_i32_0 : i32, i32, i32
  }
  func.func @transform_2(%arg0: i32) -> (i32, i32, i32) {
    %c0_i32 = arith.constant 0 : i32
    %c0_i32_0 = arith.constant 0 : i32
    %c0_i32_1 = arith.constant 0 : i32
    return %arg0, %c0_i32, %c0_i32_0 : i32, i32, i32
  }
  func.func @transform_3(%arg0: i32) -> (i32, i32, i32) {
    %c0_i32 = arith.constant 0 : i32
    %c0_i32_0 = arith.constant 0 : i32
    %c0_i32_1 = arith.constant 0 : i32
    return %arg0, %c0_i32, %c0_i32_0 : i32, i32, i32
  }
  func.func @transform_4(%arg0: i32) -> (i32, i32) {
    %c0_i32 = arith.constant 0 : i32
    %c0_i32_0 = arith.constant 0 : i32
    %c0_i32_1 = arith.constant 0 : i32
    return %c0_i32, %c0_i32_0 : i32, i32
  }
  func.func @transform_5(%arg0: i32) -> (i32, i32) {
    %c0_i32 = arith.constant 0 : i32
    %c0_i32_0 = arith.constant 0 : i32
    %c0_i32_1 = arith.constant 0 : i32
    return %c0_i32, %c0_i32_0 : i32, i32
  }
  func.func @transform_6(%arg0: i32) -> (i32, i32) {
    %c0_i32 = arith.constant 0 : i32
    %c0_i32_0 = arith.constant 0 : i32
    %c0_i32_1 = arith.constant 0 : i32
    return %c0_i32, %c0_i32_0 : i32, i32
  }
  func.func @transform_7(%arg0: i32) -> (i32, i32) {
    %c0_i32 = arith.constant 0 : i32
    %c0_i32_0 = arith.constant 0 : i32
    %c0_i32_1 = arith.constant 0 : i32
    return %c0_i32, %c0_i32_0 : i32, i32
  }
  func.func @transform_8(%arg0: i32) -> (i32, i32) {
    %c0_i32 = arith.constant 0 : i32
    %c0_i32_0 = arith.constant 0 : i32
    %c0_i32_1 = arith.constant 0 : i32
    return %c0_i32, %c0_i32_0 : i32, i32
  }
  func.func @transform_9(%arg0: i32) -> (i32, i32) {
    %c0_i32 = arith.constant 0 : i32
    %c0_i32_0 = arith.constant 0 : i32
    %c0_i32_1 = arith.constant 0 : i32
    return %c0_i32, %c0_i32_0 : i32, i32
  }
  func.func @transform_10(%arg0: i32) -> (i32, i32) {
    %c0_i32 = arith.constant 0 : i32
    %c0_i32_0 = arith.constant 0 : i32
    %c0_i32_1 = arith.constant 0 : i32
    return %c0_i32, %c0_i32_0 : i32, i32
  }
  func.func @transform_11(%arg0: i32) -> (i32, i32) {
    %c0_i32 = arith.constant 0 : i32
    %c0_i32_0 = arith.constant 0 : i32
    %c0_i32_1 = arith.constant 0 : i32
    return %c0_i32, %c0_i32_0 : i32, i32
  }
  func.func @transform_12(%arg0: i32) -> (i32, i32) {
    %c0_i32 = arith.constant 0 : i32
    %c0_i32_0 = arith.constant 0 : i32
    %c0_i32_1 = arith.constant 0 : i32
    return %c0_i32, %c0_i32_0 : i32, i32
  }
  func.func @transform_13(%arg0: i32) -> (i32, i32) {
    %c0_i32 = arith.constant 0 : i32
    %c0_i32_0 = arith.constant 0 : i32
    %c0_i32_1 = arith.constant 0 : i32
    return %c0_i32, %c0_i32_0 : i32, i32
  }
  func.func @transform_14(%arg0: i32) -> (i32, i32) {
    %c0_i32 = arith.constant 0 : i32
    %c0_i32_0 = arith.constant 0 : i32
    %c0_i32_1 = arith.constant 0 : i32
    return %c0_i32, %c0_i32_0 : i32, i32
  }
  func.func @transform_15(%arg0: i32) -> (i32, i32, i32) {
    %c0_i32 = arith.constant 0 : i32
    %c0_i32_0 = arith.constant 0 : i32
    %c0_i32_1 = arith.constant 0 : i32
    return %arg0, %c0_i32, %c0_i32_0 : i32, i32, i32
  }
  func.func @transform_16(%arg0: i32) -> (i32, i32, i32) {
    %c0_i32 = arith.constant 0 : i32
    %c0_i32_0 = arith.constant 0 : i32
    %c0_i32_1 = arith.constant 0 : i32
    return %arg0, %c0_i32, %c0_i32_0 : i32, i32, i32
  }
}

</mosaic_0001>

<llo_original>
// kernel: tpu_custom_call.1
$region0: #{tpu_custom_call.1}
  #allocation0 [shape = 'u32[]', space=smem, size = 0x4, offset = 0x4, fixed_abs, tag = 'smem constant byte address 0x4 - core index']
  #allocation1 [shape = 'u32[144,128]{1,0:T(1,128)}', space=vmem, size = 0x12000, scoped, tag = 'internal scratch']
  %s0 = inlined_call_operand.hbm [shape: f32[2,16,128], index: 0, kind: input, shape index: {}]
  %s1 = inlined_call_operand.hbm [shape: f32[2,8,128], index: 1, kind: input, shape index: {}]
  %s2 = inlined_call_operand.hbm [shape: f32[2,1,16], index: 2, kind: input, shape index: {}]
  %s3 = inlined_call_operand.hbm [shape: f32[2,1,8], index: 3, kind: input, shape index: {}]
  %s4 = inlined_call_operand.hbm [shape: f32[1,128], index: 4, kind: input, shape index: {}]
  %s5 = inlined_call_operand.hbm [shape: f32[1,128], index: 5, kind: input, shape index: {}]
  %s6 = inlined_call_operand.hbm [shape: f32[1,128], index: 6, kind: input, shape index: {}]
  %s7 = inlined_call_operand.hbm [shape: bf16[128,256], index: 7, kind: input, shape index: {}]
  %s8 = inlined_call_operand.hbm [shape: bf16[128,256], index: 8, kind: input, shape index: {}]
  %s9 = inlined_call_operand.hbm [shape: bf16[128,256], index: 9, kind: input, shape index: {}]
  %s10 = inlined_call_operand.hbm [shape: f32[1,256], index: 10, kind: input, shape index: {}]
  %s11 = inlined_call_operand.hbm [shape: bf16[128,256], index: 11, kind: input, shape index: {}]
  %s12 = inlined_call_operand.hbm [shape: bf16[128,256], index: 12, kind: input, shape index: {}]
  %s13 = inlined_call_operand.hbm [shape: bf16[128,256], index: 13, kind: input, shape index: {}]
  %s14 = inlined_call_operand.hbm [shape: f32[1,256], index: 14, kind: input, shape index: {}]
  %s15 = inlined_call_operand.hbm [shape: f32[2,16,128], index: 15, kind: output, shape index: {0}]
  %s16 = inlined_call_operand.hbm [shape: f32[2,8,128], index: 16, kind: output, shape index: {1}]
  %17 = xla_tuple %s15, %s16
  %s18 = sld [smem:[#allocation0]]
  $region161: #{tpu_custom_call.1} parent=0
    _
  %s20 = ssub.s32 1, %s18
  %s21 = scalar_select 0, %s20, %s18
  $region1: #{tpu_custom_call.1} parent=0
    #allocation2 [shape = 'u8[16384]{0}', space=vmem, size = 0x4000, scoped, tag = 'input window, operand 0']
    #allocation3 [shape = 's32[2]{0}', space=sflag, size = 0x8, scoped, tag = 'scoped memory for tpu_custom_call.1']
    #allocation4 [shape = 's32[2]{0}', space=sflag, size = 0x8, scoped, tag = 'scoped memory for tpu_custom_call.1']
    #allocation5 [shape = 'u8[8192]{0}', space=vmem, size = 0x2000, scoped, tag = 'input window, operand 1']
    #allocation6 [shape = 's32[2]{0}', space=sflag, size = 0x8, scoped, tag = 'scoped memory for tpu_custom_call.1']
    #allocation7 [shape = 'u8[1024]{0}', space=vmem, size = 0x400, scoped, tag = 'input window, operand 2']
    #allocation8 [shape = 'u8[1024]{0}', space=vmem, size = 0x400, scoped, tag = 'input window, operand 3']
    #allocation9 [shape = 's32[2]{0}', space=sflag, size = 0x8, scoped, tag = 'scoped memory for tpu_custom_call.1']
    #allocation10 [shape = 'u8[512]{0}', space=vmem, size = 0x400, scoped, tag = 'input window, operand 4, single buffered']
    #allocation11 [shape = 'u8[512]{0}', space=vmem, size = 0x400, scoped, tag = 'input window, operand 5, single buffered']
    #allocation12 [shape = 's32[1]{0}', space=sflag, size = 0x4, scoped, tag = 'scoped memory for tpu_custom_call.1']
    #allocation13 [shape = 'u8[512]{0}', space=vmem, size = 0x400, scoped, tag = 'input window, operand 6, single buffered']
    #allocation14 [shape = 'u8[65536]{0}', space=vmem, size = 0x10000, scoped, tag = 'input window, operand 7, single buffered']
    #allocation15 [shape = 's32[1]{0}', space=sflag, size = 0x4, scoped, tag = 'scoped memory for tpu_custom_call.1']
    #allocation16 [shape = 'u8[65536]{0}', space=vmem, size = 0x10000, scoped, tag = 'input window, operand 8, single buffered']
    #allocation17 [shape = 'u8[65536]{0}', space=vmem, size = 0x10000, scoped, tag = 'input window, operand 9, single buffered']
    #allocation18 [shape = 's32[1]{0}', space=sflag, size = 0x4, scoped, tag = 'scoped memory for tpu_custom_call.1']
    #allocation19 [shape = 'u8[1024]{0}', space=vmem, size = 0x400, scoped, tag = 'input window, operand 10, single buffered']
    #allocation20 [shape = 'u8[65536]{0}', space=vmem, size = 0x10000, scoped, tag = 'input window, operand 11, single buffered']
    #allocation21 [shape = 's32[1]{0}', space=sflag, size = 0x4, scoped, tag = 'scoped memory for tpu_custom_call.1']
    #allocation22 [shape = 'u8[65536]{0}', space=vmem, size = 0x10000, scoped, tag = 'input window, operand 12, single buffered']
    #allocation23 [shape = 'u8[65536]{0}', space=vmem, size = 0x10000, scoped, tag = 'input window, operand 13, single buffered']
    #allocation24 [shape = 's32[1]{0}', space=sflag, size = 0x4, scoped, tag = 'scoped memory for tpu_custom_call.1']
    #allocation25 [shape = 'u8[1024]{0}', space=vmem, size = 0x400, scoped, tag = 'input window, operand 14, single buffered']
    #allocation26 [shape = 'u8[16384]{0}', space=vmem, size = 0x4000, scoped, tag = 'output window, operand 0']
    #allocation27 [shape = 'u8[8192]{0}', space=vmem, size = 0x2000, scoped, tag = 'output window, operand 1']
    #allocation28 [shape = 's32[2]{0}', space=sflag, size = 0x8, scoped, tag = 'scoped memory for tpu_custom_call.1']
    %22 = vsyncpa [#allocation3], 0
    %s23 = scalar_lea.sflag [#allocation3], 1
    %24 = vsyncpa %s23, 0
    %25 = vsyncpa [#allocation6], 0
    %s26 = scalar_lea.sflag [#allocation6], 1
    %27 = vsyncpa %s26, 0
    %28 = vsyncpa [#allocation9], 0
    %s29 = scalar_lea.sflag [#allocation9], 1
    %30 = vsyncpa %s29, 0
    %31 = vsyncpa [#allocation12], 0
    %32 = vsyncpa [#allocation15], 0
    %33 = vsyncpa [#allocation18], 0
    %34 = vsyncpa [#allocation21], 0
    %35 = vsyncpa [#allocation24], 0
    %36 = vsyncpa [#allocation4], 0
    %s37 = scalar_lea.sflag [#allocation4], 1
    %38 = vsyncpa %s37, 0
    %39 = vsyncpa [#allocation28], 0
    %s40 = scalar_lea.sflag [#allocation28], 1
    %41 = vsyncpa %s40, 0
    loop: start=0, step=1, limit=4
    $region2: #{tpu_custom_call.1} parent=1 // loop_pre_header
      _
    $region3: #{tpu_custom_call.1} parent=1 // loop_header
      %s43 = sphi 0, %s47
      %p44 = scmp.ge.s32.totalorder %s43, 4
      %s53 = sphi 0, %s55
      %s56 = sphi 0, %s53
      %s57 = sphi 0, %s56
      %s73 = sphi 0, %s57
      %s79 = sphi 0, %s81
      %s82 = sphi 0, %s79
      %s83 = sphi 0, %s82
      %s99 = sphi 0, %s83
      %s105 = sphi 0, %s107
      %s108 = sphi 0, %s105
      %s109 = sphi 0, %s108
      %s125 = sphi 0, %s109
      %s131 = sphi 0, %s133
      %s134 = sphi 0, %s131
      %s135 = sphi 0, %s134
      %s151 = sphi 0, %s135
      %s155 = sphi 0, %s155
      %s157 = sphi 0, %s155
      %s158 = sphi 0, %s157
      %s172 = sphi 0, %s158
      %s176 = sphi 0, %s176
      %s178 = sphi 0, %s176
      %s179 = sphi 0, %s178
      %s193 = sphi 0, %s179
      %s197 = sphi 0, %s197
      %s199 = sphi 0, %s197
      %s200 = sphi 0, %s199
      %s214 = sphi 0, %s200
      %s218 = sphi 0, %s218
      %s220 = sphi 0, %s218
      %s221 = sphi 0, %s220
      %s235 = sphi 0, %s221
      %s239 = sphi 0, %s239
      %s241 = sphi 0, %s239
      %s242 = sphi 0, %s241
      %s256 = sphi 0, %s242
      %s260 = sphi 0, %s260
      %s262 = sphi 0, %s260
      %s263 = sphi 0, %s262
      %s277 = sphi 0, %s263
      %s281 = sphi 0, %s281
      %s283 = sphi 0, %s281
      %s284 = sphi 0, %s283
      %s298 = sphi 0, %s284
      %s302 = sphi 0, %s302
      %s304 = sphi 0, %s302
      %s305 = sphi 0, %s304
      %s319 = sphi 0, %s305
      %s323 = sphi 0, %s323
      %s325 = sphi 0, %s323
      %s326 = sphi 0, %s325
      %s340 = sphi 0, %s326
      %s344 = sphi 0, %s344
      %s346 = sphi 0, %s344
      %s347 = sphi 0, %s346
      %s361 = sphi 0, %s347
      %s365 = sphi 0, %s365
      %s367 = sphi 0, %s365
      %s368 = sphi 0, %s367
      %s382 = sphi 0, %s368
      %s388 = sphi 0, %s390
      %s391 = sphi 0, %s388
      %s392 = sphi 0, %s391
      %s408 = sphi 0, %s392
      %s414 = sphi 0, %s416
      %s417 = sphi 0, %s414
      %s418 = sphi 0, %s417
      %s434 = sphi 0, %s418
    $region4: #{tpu_custom_call.1} parent=1 // loop_header_branch
      %46 = sbr.rel (%p44) target = $region8
    $region5: #{tpu_custom_call.1} parent=1 // loop_body
      %s48 = ssub.s32 %s43, 1
      %s49 = ssub.s32 %s43, 2
      %s50 = sadd.s32 %s43, 1
      %s51 = ssub.s32 %s43, %s50
      %p52 = scmp.eq.s32.totalorder %s51, 0
      %s54 = sadd.s32 %s53, 1
      %s55 = scalar_select %p52, %s53, %s54
      %p58 = pneg %p52
      %p59 = scmp.eq.s32.totalorder %s43, 1
      %p60 = por %p58, %p59
      %p61 = scmp.ne.s32.totalorder %s53, %s56
      %p62 = scmp.eq.s32.totalorder %s43, 0
      %p63 = por %p61, %p62
      %p64 = scmp.ne.s32.totalorder %s53, %s56
      %p65 = scmp.eq.s32.totalorder %s48, 1
      %p66 = por %p64, %p65
      %p67 = scmp.ne.s32.totalorder %s56, %s57
      %p68 = scmp.eq.s32.totalorder %s48, 0
      %p69 = por %p67, %p68
      %p70 = scmp.ne.s32.totalorder %s56, %s57
      %p71 = scmp.eq.s32.totalorder %s49, 1
      %p72 = por %p70, %p71
      %p74 = scmp.ne.s32.totalorder %s57, %s73
      %p75 = scmp.eq.s32.totalorder %s49, 0
      %p76 = por %p74, %p75
      %s77 = ssub.s32 %s43, %s50
      %p78 = scmp.eq.s32.totalorder %s77, 0
      %s80 = sadd.s32 %s79, 1
      %s81 = scalar_select %p78, %s79, %s80
      %p84 = pneg %p78
      %p85 = scmp.eq.s32.totalorder %s43, 1
      %p86 = por %p84, %p85
      %p87 = scmp.ne.s32.totalorder %s79, %s82
      %p88 = scmp.eq.s32.totalorder %s43, 0
      %p89 = por %p87, %p88
      %p90 = scmp.ne.s32.totalorder %s79, %s82
      %p91 = scmp.eq.s32.totalorder %s48, 1
      %p92 = por %p90, %p91
      %p93 = scmp.ne.s32.totalorder %s82, %s83
      %p94 = scmp.eq.s32.totalorder %s48, 0
      %p95 = por %p93, %p94
      %p96 = scmp.ne.s32.totalorder %s82, %s83
      %p97 = scmp.eq.s32.totalorder %s49, 1
      %p98 = por %p96, %p97
      %p100 = scmp.ne.s32.totalorder %s83, %s99
      %p101 = scmp.eq.s32.totalorder %s49, 0
      %p102 = por %p100, %p101
      %s103 = ssub.s32 %s43, %s50
      %p104 = scmp.eq.s32.totalorder %s103, 0
      %s106 = sadd.s32 %s105, 1
      %s107 = scalar_select %p104, %s105, %s106
      %p110 = pneg %p104
      %p111 = scmp.eq.s32.totalorder %s43, 1
      %p112 = por %p110, %p111
      %p113 = scmp.ne.s32.totalorder %s105, %s108
      %p114 = scmp.eq.s32.totalorder %s43, 0
      %p115 = por %p113, %p114
      %p116 = scmp.ne.s32.totalorder %s105, %s108
      %p117 = scmp.eq.s32.totalorder %s48, 1
      %p118 = por %p116, %p117
      %p119 = scmp.ne.s32.totalorder %s108, %s109
      %p120 = scmp.eq.s32.totalorder %s48, 0
      %p121 = por %p119, %p120
      %p122 = scmp.ne.s32.totalorder %s108, %s109
      %p123 = scmp.eq.s32.totalorder %s49, 1
      %p124 = por %p122, %p123
      %p126 = scmp.ne.s32.totalorder %s109, %s125
      %p127 = scmp.eq.s32.totalorder %s49, 0
      %p128 = por %p126, %p127
      %s129 = ssub.s32 %s43, %s50
      %p130 = scmp.eq.s32.totalorder %s129, 0
      %s132 = sadd.s32 %s131, 1
      %s133 = scalar_select %p130, %s131, %s132
      %p136 = pneg %p130
      %p137 = scmp.eq.s32.totalorder %s43, 1
      %p138 = por %p136, %p137
      %p139 = scmp.ne.s32.totalorder %s131, %s134
      %p140 = scmp.eq.s32.totalorder %s43, 0
      %p141 = por %p139, %p140
      %p142 = scmp.ne.s32.totalorder %s131, %s134
      %p143 = scmp.eq.s32.totalorder %s48, 1
      %p144 = por %p142, %p143
      %p145 = scmp.ne.s32.totalorder %s134, %s135
      %p146 = scmp.eq.s32.totalorder %s48, 0
      %p147 = por %p145, %p146
      %p148 = scmp.ne.s32.totalorder %s134, %s135
      %p149 = scmp.eq.s32.totalorder %s49, 1
      %p150 = por %p148, %p149
      %p152 = scmp.ne.s32.totalorder %s135, %s151
      %p153 = scmp.eq.s32.totalorder %s49, 0
      %p154 = por %p152, %p153
      %s156 = sadd.s32 %s155, 1
      %p159 = scmp.eq.s32.totalorder %s43, 1
      %p160 = scmp.ne.s32.totalorder %s155, %s157
      %p161 = scmp.eq.s32.totalorder %s43, 0
      %p162 = por %p160, %p161
      %p163 = scmp.ne.s32.totalorder %s155, %s157
      %p164 = scmp.eq.s32.totalorder %s48, 1
      %p165 = por %p163, %p164
      %p166 = scmp.ne.s32.totalorder %s157, %s158
      %p167 = scmp.eq.s32.totalorder %s48, 0
      %p168 = por %p166, %p167
      %p169 = scmp.ne.s32.totalorder %s157, %s158
      %p170 = scmp.eq.s32.totalorder %s49, 1
      %p171 = por %p169, %p170
      %p173 = scmp.ne.s32.totalorder %s158, %s172
      %p174 = scmp.eq.s32.totalorder %s49, 0
      %p175 = por %p173, %p174
      %s177 = sadd.s32 %s176, 1
      %p180 = scmp.eq.s32.totalorder %s43, 1
      %p181 = scmp.ne.s32.totalorder %s176, %s178
      %p182 = scmp.eq.s32.totalorder %s43, 0
      %p183 = por %p181, %p182
      %p184 = scmp.ne.s32.totalorder %s176, %s178
      %p185 = scmp.eq.s32.totalorder %s48, 1
      %p186 = por %p184, %p185
      %p187 = scmp.ne.s32.totalorder %s178, %s179
      %p188 = scmp.eq.s32.totalorder %s48, 0
      %p189 = por %p187, %p188
      %p190 = scmp.ne.s32.totalorder %s178, %s179
      %p191 = scmp.eq.s32.totalorder %s49, 1
      %p192 = por %p190, %p191
      %p194 = scmp.ne.s32.totalorder %s179, %s193
      %p195 = scmp.eq.s32.totalorder %s49, 0
      %p196 = por %p194, %p195
      %s198 = sadd.s32 %s197, 1
      %p201 = scmp.eq.s32.totalorder %s43, 1
      %p202 = scmp.ne.s32.totalorder %s197, %s199
      %p203 = scmp.eq.s32.totalorder %s43, 0
      %p204 = por %p202, %p203
      %p205 = scmp.ne.s32.totalorder %s197, %s199
      %p206 = scmp.eq.s32.totalorder %s48, 1
      %p207 = por %p205, %p206
      %p208 = scmp.ne.s32.totalorder %s199, %s200
      %p209 = scmp.eq.s32.totalorder %s48, 0
      %p210 = por %p208, %p209
      %p211 = scmp.ne.s32.totalorder %s199, %s200
      %p212 = scmp.eq.s32.totalorder %s49, 1
      %p213 = por %p211, %p212
      %p215 = scmp.ne.s32.totalorder %s200, %s214
      %p216 = scmp.eq.s32.totalorder %s49, 0
      %p217 = por %p215, %p216
      %s219 = sadd.s32 %s218, 1
      %p222 = scmp.eq.s32.totalorder %s43, 1
      %p223 = scmp.ne.s32.totalorder %s218, %s220
      %p224 = scmp.eq.s32.totalorder %s43, 0
      %p225 = por %p223, %p224
      %p226 = scmp.ne.s32.totalorder %s218, %s220
      %p227 = scmp.eq.s32.totalorder %s48, 1
      %p228 = por %p226, %p227
      %p229 = scmp.ne.s32.totalorder %s220, %s221
      %p230 = scmp.eq.s32.totalorder %s48, 0
      %p231 = por %p229, %p230
      %p232 = scmp.ne.s32.totalorder %s220, %s221
      %p233 = scmp.eq.s32.totalorder %s49, 1
      %p234 = por %p232, %p233
      %p236 = scmp.ne.s32.totalorder %s221, %s235
      %p237 = scmp.eq.s32.totalorder %s49, 0
      %p238 = por %p236, %p237
      %s240 = sadd.s32 %s239, 1
      %p243 = scmp.eq.s32.totalorder %s43, 1
      %p244 = scmp.ne.s32.totalorder %s239, %s241
      %p245 = scmp.eq.s32.totalorder %s43, 0
      %p246 = por %p244, %p245
      %p247 = scmp.ne.s32.totalorder %s239, %s241
      %p248 = scmp.eq.s32.totalorder %s48, 1
      %p249 = por %p247, %p248
      %p250 = scmp.ne.s32.totalorder %s241, %s242
      %p251 = scmp.eq.s32.totalorder %s48, 0
      %p252 = por %p250, %p251
      %p253 = scmp.ne.s32.totalorder %s241, %s242
      %p254 = scmp.eq.s32.totalorder %s49, 1
      %p255 = por %p253, %p254
      %p257 = scmp.ne.s32.totalorder %s242, %s256
      %p258 = scmp.eq.s32.totalorder %s49, 0
      %p259 = por %p257, %p258
      %s261 = sadd.s32 %s260, 1
      %p264 = scmp.eq.s32.totalorder %s43, 1
      %p265 = scmp.ne.s32.totalorder %s260, %s262
      %p266 = scmp.eq.s32.totalorder %s43, 0
      %p267 = por %p265, %p266
      %p268 = scmp.ne.s32.totalorder %s260, %s262
      %p269 = scmp.eq.s32.totalorder %s48, 1
      %p270 = por %p268, %p269
      %p271 = scmp.ne.s32.totalorder %s262, %s263
      %p272 = scmp.eq.s32.totalorder %s48, 0
      %p273 = por %p271, %p272
      %p274 = scmp.ne.s32.totalorder %s262, %s263
      %p275 = scmp.eq.s32.totalorder %s49, 1
      %p276 = por %p274, %p275
      %p278 = scmp.ne.s32.totalorder %s263, %s277
      %p279 = scmp.eq.s32.totalorder %s49, 0
      %p280 = por %p278, %p279
      %s282 = sadd.s32 %s281, 1
      %p285 = scmp.eq.s32.totalorder %s43, 1
      %p286 = scmp.ne.s32.totalorder %s281, %s283
      %p287 = scmp.eq.s32.totalorder %s43, 0
      %p288 = por %p286, %p287
      %p289 = scmp.ne.s32.totalorder %s281, %s283
      %p290 = scmp.eq.s32.totalorder %s48, 1
      %p291 = por %p289, %p290
      %p292 = scmp.ne.s32.totalorder %s283, %s284
      %p293 = scmp.eq.s32.totalorder %s48, 0
      %p294 = por %p292, %p293
      %p295 = scmp.ne.s32.totalorder %s283, %s284
      %p296 = scmp.eq.s32.totalorder %s49, 1
      %p297 = por %p295, %p296
      %p299 = scmp.ne.s32.totalorder %s284, %s298
      %p300 = scmp.eq.s32.totalorder %s49, 0
      %p301 = por %p299, %p300
      %s303 = sadd.s32 %s302, 1
      %p306 = scmp.eq.s32.totalorder %s43, 1
      %p307 = scmp.ne.s32.totalorder %s302, %s304
      %p308 = scmp.eq.s32.totalorder %s43, 0
      %p309 = por %p307, %p308
      %p310 = scmp.ne.s32.totalorder %s302, %s304
      %p311 = scmp.eq.s32.totalorder %s48, 1
      %p312 = por %p310, %p311
      %p313 = scmp.ne.s32.totalorder %s304, %s305
      %p314 = scmp.eq.s32.totalorder %s48, 0
      %p315 = por %p313, %p314
      %p316 = scmp.ne.s32.totalorder %s304, %s305
      %p317 = scmp.eq.s32.totalorder %s49, 1
      %p318 = por %p316, %p317
      %p320 = scmp.ne.s32.totalorder %s305, %s319
      %p321 = scmp.eq.s32.totalorder %s49, 0
      %p322 = por %p320, %p321
      %s324 = sadd.s32 %s323, 1
      %p327 = scmp.eq.s32.totalorder %s43, 1
      %p328 = scmp.ne.s32.totalorder %s323, %s325
      %p329 = scmp.eq.s32.totalorder %s43, 0
      %p330 = por %p328, %p329
      %p331 = scmp.ne.s32.totalorder %s323, %s325
      %p332 = scmp.eq.s32.totalorder %s48, 1
      %p333 = por %p331, %p332
      %p334 = scmp.ne.s32.totalorder %s325, %s326
      %p335 = scmp.eq.s32.totalorder %s48, 0
      %p336 = por %p334, %p335
      %p337 = scmp.ne.s32.totalorder %s325, %s326
      %p338 = scmp.eq.s32.totalorder %s49, 1
      %p339 = por %p337, %p338
      %p341 = scmp.ne.s32.totalorder %s326, %s340
      %p342 = scmp.eq.s32.totalorder %s49, 0
      %p343 = por %p341, %p342
      %s345 = sadd.s32 %s344, 1
      %p348 = scmp.eq.s32.totalorder %s43, 1
      %p349 = scmp.ne.s32.totalorder %s344, %s346
      %p350 = scmp.eq.s32.totalorder %s43, 0
      %p351 = por %p349, %p350
      %p352 = scmp.ne.s32.totalorder %s344, %s346
      %p353 = scmp.eq.s32.totalorder %s48, 1
      %p354 = por %p352, %p353
      %p355 = scmp.ne.s32.totalorder %s346, %s347
      %p356 = scmp.eq.s32.totalorder %s48, 0
      %p357 = por %p355, %p356
      %p358 = scmp.ne.s32.totalorder %s346, %s347
      %p359 = scmp.eq.s32.totalorder %s49, 1
      %p360 = por %p358, %p359
      %p362 = scmp.ne.s32.totalorder %s347, %s361
      %p363 = scmp.eq.s32.totalorder %s49, 0
      %p364 = por %p362, %p363
      %s366 = sadd.s32 %s365, 1
      %p369 = scmp.eq.s32.totalorder %s43, 1
      %p370 = scmp.ne.s32.totalorder %s365, %s367
      %p371 = scmp.eq.s32.totalorder %s43, 0
      %p372 = por %p370, %p371
      %p373 = scmp.ne.s32.totalorder %s365, %s367
      %p374 = scmp.eq.s32.totalorder %s48, 1
      %p375 = por %p373, %p374
      %p376 = scmp.ne.s32.totalorder %s367, %s368
      %p377 = scmp.eq.s32.totalorder %s48, 0
      %p378 = por %p376, %p377
      %p379 = scmp.ne.s32.totalorder %s367, %s368
      %p380 = scmp.eq.s32.totalorder %s49, 1
      %p381 = por %p379, %p380
      %p383 = scmp.ne.s32.totalorder %s368, %s382
      %p384 = scmp.eq.s32.totalorder %s49, 0
      %p385 = por %p383, %p384
      %s386 = ssub.s32 %s43, %s50
      %p387 = scmp.eq.s32.totalorder %s386, 0
      %s389 = sadd.s32 %s388, 1
      %s390 = scalar_select %p387, %s388, %s389
      %p393 = pneg %p387
      %p394 = scmp.eq.s32.totalorder %s43, 1
      %p395 = por %p393, %p394
      %p396 = scmp.ne.s32.totalorder %s388, %s391
      %p397 = scmp.eq.s32.totalorder %s43, 0
      %p398 = por %p396, %p397
      %p399 = scmp.ne.s32.totalorder %s388, %s391
      %p400 = scmp.eq.s32.totalorder %s48, 1
      %p401 = por %p399, %p400
      %p402 = scmp.ne.s32.totalorder %s391, %s392
      %p403 = scmp.eq.s32.totalorder %s48, 0
      %p404 = por %p402, %p403
      %p405 = scmp.ne.s32.totalorder %s391, %s392
      %p406 = scmp.eq.s32.totalorder %s49, 1
      %p407 = por %p405, %p406
      %p409 = scmp.ne.s32.totalorder %s392, %s408
      %p410 = scmp.eq.s32.totalorder %s49, 0
      %p411 = por %p409, %p410
      %s412 = ssub.s32 %s43, %s50
      %p413 = scmp.eq.s32.totalorder %s412, 0
      %s415 = sadd.s32 %s414, 1
      %s416 = scalar_select %p413, %s414, %s415
      %p419 = pneg %p413
      %p420 = scmp.eq.s32.totalorder %s43, 1
      %p421 = por %p419, %p420
      %p422 = scmp.ne.s32.totalorder %s414, %s417
      %p423 = scmp.eq.s32.totalorder %s43, 0
      %p424 = por %p422, %p423
      %p425 = scmp.ne.s32.totalorder %s414, %s417
      %p426 = scmp.eq.s32.totalorder %s48, 1
      %p427 = por %p425, %p426
      %p428 = scmp.ne.s32.totalorder %s417, %s418
      %p429 = scmp.eq.s32.totalorder %s48, 0
      %p430 = por %p428, %p429
      %p431 = scmp.ne.s32.totalorder %s417, %s418
      %p432 = scmp.eq.s32.totalorder %s49, 1
      %p433 = por %p431, %p432
      %p435 = scmp.ne.s32.totalorder %s418, %s434
      %p436 = scmp.eq.s32.totalorder %s49, 0
      %p437 = por %p435, %p436
      %p438 = scmp.le.s32.totalorder 1, %s43
      %p439 = scmp.lt.s32.totalorder %s43, 3
      %p440 = pnand %p438, %p439
      %p441 = pneg %p440
      // Predicated region
      $region9: #{tpu_custom_call.1} parent=5 // pred_check
        _
      $region10: #{tpu_custom_call.1} parent=5 // pred_check_branch
        %443 = sbr.rel (%p440) target = $region12
      $region11: #{tpu_custom_call.1} parent=5 // pred_region
        %s444 = ssub.s32 %s43, 1
        // Predicated region
        $region13: #{tpu_custom_call.1} parent=11 // pred_check
          %p445 = pneg %p168
        $region14: #{tpu_custom_call.1} parent=11 // pred_check_branch
          %447 = sbr.rel (%p445) target = $region16
        $region15: #{tpu_custom_call.1} parent=11 // pred_region
          %s449 = ssub.s32 16, 16
          %450 = vsyncadd [#allocation9], %s449
          %s452 = sshll.u32 [#allocation10], 4
          %s453 = int_to_ptr.vmem [resolvable:$true] %s452
          %455 = dma.hbm_to_vmem [thread:$0]  %s4, 16, %s453, [#allocation9]
        $region16: #{tpu_custom_call.1} parent=11 // pred_fallthru
          _
        // Predicated region
        $region17: #{tpu_custom_call.1} parent=11 // pred_check
          %p456 = pneg %p189
        $region18: #{tpu_custom_call.1} parent=11 // pred_check_branch
          %458 = sbr.rel (%p456) target = $region20
        $region19: #{tpu_custom_call.1} parent=11 // pred_region
          %s460 = ssub.s32 16, 16
          %461 = vsyncadd [#allocation12], %s460
          %s463 = sshll.u32 [#allocation11], 4
          %s464 = int_to_ptr.vmem [resolvable:$true] %s463
          %466 = dma.hbm_to_vmem [thread:$0]  %s5, 16, %s464, [#allocation12]
        $region20: #{tpu_custom_call.1} parent=11 // pred_fallthru
          _
        // Predicated region
        $region21: #{tpu_custom_call.1} parent=11 // pred_check
          %p467 = pneg %p210
        $region22: #{tpu_custom_call.1} parent=11 // pred_check_branch
          %469 = sbr.rel (%p467) target = $region24
        $region23: #{tpu_custom_call.1} parent=11 // pred_region
          %s471 = ssub.s32 16, 16
          %472 = vsyncadd [#allocation12], %s471
          %s474 = sshll.u32 [#allocation13], 4
          %s475 = int_to_ptr.vmem [resolvable:$true] %s474
          %477 = dma.hbm_to_vmem [thread:$0]  %s6, 16, %s475, [#allocation12]
        $region24: #{tpu_custom_call.1} parent=11 // pred_fallthru
          _
        // Predicated region
        $region25: #{tpu_custom_call.1} parent=11 // pred_check
          %p478 = pneg %p231
        $region26: #{tpu_custom_call.1} parent=11 // pred_check_branch
          %480 = sbr.rel (%p478) target = $region28
        $region27: #{tpu_custom_call.1} parent=11 // pred_region
          %s482 = ssub.s32 2048, 2048
          %483 = vsyncadd [#allocation15], %s482
          %s484 = sshll.u32 [#allocation14], 4
          %s485 = int_to_ptr.vmem [resolvable:$true] %s484
          %490 = dma.hbm_to_vmem [thread:$0]  %s7, 2048, %s485, [#allocation15], 128, 128, 8
        $region28: #{tpu_custom_call.1} parent=11 // pred_fallthru
          _
        // Predicated region
        $region29: #{tpu_custom_call.1} parent=11 // pred_check
          %p491 = pneg %p252
        $region30: #{tpu_custom_call.1} parent=11 // pred_check_branch
          %493 = sbr.rel (%p491) target = $region32
        $region31: #{tpu_custom_call.1} parent=11 // pred_region
          %s495 = ssub.s32 2048, 2048
          %496 = vsyncadd [#allocation15], %s495
          %s497 = sshll.u32 [#allocation16], 4
          %s498 = int_to_ptr.vmem [resolvable:$true] %s497
          %503 = dma.hbm_to_vmem [thread:$0]  %s8, 2048, %s498, [#allocation15], 128, 128, 8
        $region32: #{tpu_custom_call.1} parent=11 // pred_fallthru
          _
        // Predicated region
        $region33: #{tpu_custom_call.1} parent=11 // pred_check
          %p504 = pneg %p273
        $region34: #{tpu_custom_call.1} parent=11 // pred_check_branch
          %506 = sbr.rel (%p504) target = $region36
        $region35: #{tpu_custom_call.1} parent=11 // pred_region
          %s508 = ssub.s32 2048, 2048
          %509 = vsyncadd [#allocation18], %s508
          %s510 = sshll.u32 [#allocation17], 4
          %s511 = int_to_ptr.vmem [resolvable:$true] %s510
          %516 = dma.hbm_to_vmem [thread:$0]  %s9, 2048, %s511, [#allocation18], 128, 128, 8
        $region36: #{tpu_custom_call.1} parent=11 // pred_fallthru
          _
        // Predicated region
        $region37: #{tpu_custom_call.1} parent=11 // pred_check
          %p517 = pneg %p294
        $region38: #{tpu_custom_call.1} parent=11 // pred_check_branch
          %519 = sbr.rel (%p517) target = $region40
        $region39: #{tpu_custom_call.1} parent=11 // pred_region
          %s521 = ssub.s32 32, 32
          %522 = vsyncadd [#allocation18], %s521
          %s524 = sshll.u32 [#allocation19], 4
          %s525 = int_to_ptr.vmem [resolvable:$true] %s524
          %527 = dma.hbm_to_vmem [thread:$0]  %s10, 32, %s525, [#allocation18]
        $region40: #{tpu_custom_call.1} parent=11 // pred_fallthru
          _
        // Predicated region
        $region41: #{tpu_custom_call.1} parent=11 // pred_check
          %p528 = pneg %p315
        $region42: #{tpu_custom_call.1} parent=11 // pred_check_branch
          %530 = sbr.rel (%p528) target = $region44
        $region43: #{tpu_custom_call.1} parent=11 // pred_region
          %s532 = ssub.s32 2048, 2048
          %533 = vsyncadd [#allocation21], %s532
          %s534 = sshll.u32 [#allocation20], 4
          %s535 = int_to_ptr.vmem [resolvable:$true] %s534
          %540 = dma.hbm_to_vmem [thread:$0]  %s11, 2048, %s535, [#allocation21], 128, 128, 8
        $region44: #{tpu_custom_call.1} parent=11 // pred_fallthru
          _
        // Predicated region
        $region45: #{tpu_custom_call.1} parent=11 // pred_check
          %p541 = pneg %p336
        $region46: #{tpu_custom_call.1} parent=11 // pred_check_branch
          %543 = sbr.rel (%p541) target = $region48
        $region47: #{tpu_custom_call.1} parent=11 // pred_region
          %s545 = ssub.s32 2048, 2048
          %546 = vsyncadd [#allocation21], %s545
          %s547 = sshll.u32 [#allocation22], 4
          %s548 = int_to_ptr.vmem [resolvable:$true] %s547
          %553 = dma.hbm_to_vmem [thread:$0]  %s12, 2048, %s548, [#allocation21], 128, 128, 8
        $region48: #{tpu_custom_call.1} parent=11 // pred_fallthru
          _
        // Predicated region
        $region49: #{tpu_custom_call.1} parent=11 // pred_check
          %p554 = pneg %p357
        $region50: #{tpu_custom_call.1} parent=11 // pred_check_branch
          %556 = sbr.rel (%p554) target = $region52
        $region51: #{tpu_custom_call.1} parent=11 // pred_region
          %s558 = ssub.s32 2048, 2048
          %559 = vsyncadd [#allocation24], %s558
          %s560 = sshll.u32 [#allocation23], 4
          %s561 = int_to_ptr.vmem [resolvable:$true] %s560
          %566 = dma.hbm_to_vmem [thread:$0]  %s13, 2048, %s561, [#allocation24], 128, 128, 8
        $region52: #{tpu_custom_call.1} parent=11 // pred_fallthru
          _
        // Predicated region
        $region53: #{tpu_custom_call.1} parent=11 // pred_check
          %p567 = pneg %p378
        $region54: #{tpu_custom_call.1} parent=11 // pred_check_branch
          %569 = sbr.rel (%p567) target = $region56
        $region55: #{tpu_custom_call.1} parent=11 // pred_region
          %s571 = ssub.s32 32, 32
          %572 = vsyncadd [#allocation24], %s571
          %s574 = sshll.u32 [#allocation25], 4
          %s575 = int_to_ptr.vmem [resolvable:$true] %s574
          %577 = dma.hbm_to_vmem [thread:$0]  %s14, 32, %s575, [#allocation24]
        $region56: #{tpu_custom_call.1} parent=11 // pred_fallthru
          _
      $region12: #{tpu_custom_call.1} parent=5 // pred_fallthru
        _
      %p578 = scmp.lt.s32.totalorder %s43, 2
      // Predicated region
      $region57: #{tpu_custom_call.1} parent=5 // pred_check
        %p579 = pneg %p578
      $region58: #{tpu_custom_call.1} parent=5 // pred_check_branch
        %581 = sbr.rel (%p579) target = $region60
      $region59: #{tpu_custom_call.1} parent=5 // pred_region
        // Predicated region
        $region61: #{tpu_custom_call.1} parent=59 // pred_check
          %p582 = pneg %p63
        $region62: #{tpu_custom_call.1} parent=59 // pred_check_branch
          %584 = sbr.rel (%p582) target = $region64
        $region63: #{tpu_custom_call.1} parent=59 // pred_region
          %s585 = sand.u32 %s53, 1
          %s586 = scalar_lea.sflag [#allocation3], %s585
          %s587 = sand.u32 %s53, 1
          %s588 = smul.addr %s587, 16
          %s589 = scalar_lea.vmem [#allocation2], %s588
          %s591 = ssub.s32 256, 256
          %592 = vsyncadd %s586, %s591
          %s593 = smul.addr %s43, 2
          %s594 = smul.addr %s593, 128
          %s595 = scalar_lea.hbm %s0, %s594
          %s596 = sshll.u32 %s589, 4
          %s597 = int_to_ptr.vmem [resolvable:$true] %s596
          %602 = dma.hbm_to_vmem [thread:$0]  %s595, 256, %s597, %s586, 128, 128, 8
        $region64: #{tpu_custom_call.1} parent=59 // pred_fallthru
          _
        // Predicated region
        $region65: #{tpu_custom_call.1} parent=59 // pred_check
          %p603 = pneg %p89
        $region66: #{tpu_custom_call.1} parent=59 // pred_check_branch
          %605 = sbr.rel (%p603) target = $region68
        $region67: #{tpu_custom_call.1} parent=59 // pred_region
          %s606 = sand.u32 %s43, 1
          %s607 = scalar_lea.sflag [#allocation6], %s606
          %s608 = sand.u32 %s79, 1
          %s609 = smul.addr %s608, 8
          %s610 = scalar_lea.vmem [#allocation5], %s609
          %s612 = ssub.s32 128, 128
          %613 = vsyncadd %s607, %s612
          %s614 = smul.addr %s43, 128
          %s615 = scalar_lea.hbm %s1, %s614
          %s617 = sshll.u32 %s610, 4
          %s618 = int_to_ptr.vmem [resolvable:$true] %s617
          %620 = dma.hbm_to_vmem [thread:$0]  %s615, 128, %s618, %s607
        $region68: #{tpu_custom_call.1} parent=59 // pred_fallthru
          _
        // Predicated region
        $region69: #{tpu_custom_call.1} parent=59 // pred_check
          %p621 = pneg %p115
        $region70: #{tpu_custom_call.1} parent=59 // pred_check_branch
          %623 = sbr.rel (%p621) target = $region72
        $region71: #{tpu_custom_call.1} parent=59 // pred_region
          %s624 = sand.u32 %s43, 1
          %s625 = scalar_lea.sflag [#allocation6], %s624
          %s626 = sand.u32 %s105, 1
          %s627 = scalar_lea.vmem [#allocation7], %s626
          %s629 = ssub.s32 16, 16
          %630 = vsyncadd %s625, %s629
          %s631 = smul.addr %s43, 16
          %s632 = scalar_lea.hbm %s2, %s631
          %s634 = sshll.u32 %s627, 4
          %s635 = int_to_ptr.vmem [resolvable:$true] %s634
          %637 = dma.hbm_to_vmem [thread:$0]  %s632, 16, %s635, %s625
        $region72: #{tpu_custom_call.1} parent=59 // pred_fallthru
          _
        // Predicated region
        $region73: #{tpu_custom_call.1} parent=59 // pred_check
          %p638 = pneg %p141
        $region74: #{tpu_custom_call.1} parent=59 // pred_check_branch
          %640 = sbr.rel (%p638) target = $region76
        $region75: #{tpu_custom_call.1} parent=59 // pred_region
          %s641 = sand.u32 %s43, 1
          %s642 = scalar_lea.sflag [#allocation9], %s641
          %s643 = sand.u32 %s131, 1
          %s644 = scalar_lea.vmem [#allocation8], %s643
          %s646 = ssub.s32 16, 16
          %647 = vsyncadd %s642, %s646
          %s648 = smul.addr %s43, 16
          %s649 = scalar_lea.hbm %s3, %s648
          %s651 = sshll.u32 %s644, 4
          %s652 = int_to_ptr.vmem [resolvable:$true] %s651
          %654 = dma.hbm_to_vmem [thread:$0]  %s649, 16, %s652, %s642
        $region76: #{tpu_custom_call.1} parent=59 // pred_fallthru
          _
      $region60: #{tpu_custom_call.1} parent=5 // pred_fallthru
        _
      %p655 = scmp.le.s32.totalorder 1, %s43
      %p656 = scmp.lt.s32.totalorder %s43, 3
      %p657 = pnand %p655, %p656
      %p658 = pneg %p657
      // Predicated region
      $region77: #{tpu_custom_call.1} parent=5 // pred_check
        _
      $region78: #{tpu_custom_call.1} parent=5 // pred_check_branch
        %660 = sbr.rel (%p657) target = $region80
      $region79: #{tpu_custom_call.1} parent=5 // pred_region
        %s661 = ssub.s32 %s43, 1
        %s662 = sand.u32 %s56, 1
        %s663 = scalar_lea.sflag [#allocation3], %s662
        %s664 = sand.u32 %s56, 1
        %s665 = smul.addr %s664, 16
        %s666 = scalar_lea.vmem [#allocation2], %s665
        // Predicated region
        $region81: #{tpu_custom_call.1} parent=79 // pred_check
          %p667 = pneg %p69
        $region82: #{tpu_custom_call.1} parent=79 // pred_check_branch
          %669 = sbr.rel (%p667) target = $region84
        $region83: #{tpu_custom_call.1} parent=79 // pred_region
          %670 = dma.done %s663, 256
        $region84: #{tpu_custom_call.1} parent=79 // pred_fallthru
          _
        %s671 = sand.u32 %s48, 1
        %s672 = scalar_lea.sflag [#allocation6], %s671
        %s673 = sand.u32 %s82, 1
        %s674 = smul.addr %s673, 8
        %s675 = scalar_lea.vmem [#allocation5], %s674
        // Predicated region
        $region85: #{tpu_custom_call.1} parent=79 // pred_check
          %p676 = pneg %p95
        $region86: #{tpu_custom_call.1} parent=79 // pred_check_branch
          %678 = sbr.rel (%p676) target = $region88
        $region87: #{tpu_custom_call.1} parent=79 // pred_region
          %679 = dma.done %s672, 128
        $region88: #{tpu_custom_call.1} parent=79 // pred_fallthru
          _
        %s680 = sand.u32 %s48, 1
        %s681 = scalar_lea.sflag [#allocation6], %s680
        %s682 = sand.u32 %s108, 1
        %s683 = scalar_lea.vmem [#allocation7], %s682
        // Predicated region
        $region89: #{tpu_custom_call.1} parent=79 // pred_check
          %p684 = pneg %p121
        $region90: #{tpu_custom_call.1} parent=79 // pred_check_branch
          %686 = sbr.rel (%p684) target = $region92
        $region91: #{tpu_custom_call.1} parent=79 // pred_region
          %687 = dma.done %s681, 16
        $region92: #{tpu_custom_call.1} parent=79 // pred_fallthru
          _
        %s688 = sand.u32 %s48, 1
        %s689 = scalar_lea.sflag [#allocation9], %s688
        %s690 = sand.u32 %s134, 1
        %s691 = scalar_lea.vmem [#allocation8], %s690
        // Predicated region
        $region93: #{tpu_custom_call.1} parent=79 // pred_check
          %p692 = pneg %p147
        $region94: #{tpu_custom_call.1} parent=79 // pred_check_branch
          %694 = sbr.rel (%p692) target = $region96
        $region95: #{tpu_custom_call.1} parent=79 // pred_region
          %695 = dma.done %s689, 16
        $region96: #{tpu_custom_call.1} parent=79 // pred_fallthru
          _
        // Predicated region
        $region97: #{tpu_custom_call.1} parent=79 // pred_check
          %p696 = pneg %p168
        $region98: #{tpu_custom_call.1} parent=79 // pred_check_branch
          %698 = sbr.rel (%p696) target = $region100
        $region99: #{tpu_custom_call.1} parent=79 // pred_region
          %699 = dma.done [#allocation9], 16
        $region100: #{tpu_custom_call.1} parent=79 // pred_fallthru
          _
        // Predicated region
        $region101: #{tpu_custom_call.1} parent=79 // pred_check
          %p700 = pneg %p189
        $region102: #{tpu_custom_call.1} parent=79 // pred_check_branch
          %702 = sbr.rel (%p700) target = $region104
        $region103: #{tpu_custom_call.1} parent=79 // pred_region
          %703 = dma.done [#allocation12], 16
        $region104: #{tpu_custom_call.1} parent=79 // pred_fallthru
          _
        // Predicated region
        $region105: #{tpu_custom_call.1} parent=79 // pred_check
          %p704 = pneg %p210
        $region106: #{tpu_custom_call.1} parent=79 // pred_check_branch
          %706 = sbr.rel (%p704) target = $region108
        $region107: #{tpu_custom_call.1} parent=79 // pred_region
          %707 = dma.done [#allocation12], 16
        $region108: #{tpu_custom_call.1} parent=79 // pred_fallthru
          _
        // Predicated region
        $region109: #{tpu_custom_call.1} parent=79 // pred_check
          %p708 = pneg %p231
        $region110: #{tpu_custom_call.1} parent=79 // pred_check_branch
          %710 = sbr.rel (%p708) target = $region112
        $region111: #{tpu_custom_call.1} parent=79 // pred_region
          %711 = dma.done [#allocation15], 2048
        $region112: #{tpu_custom_call.1} parent=79 // pred_fallthru
          _
        // Predicated region
        $region113: #{tpu_custom_call.1} parent=79 // pred_check
          %p712 = pneg %p252
        $region114: #{tpu_custom_call.1} parent=79 // pred_check_branch
          %714 = sbr.rel (%p712) target = $region116
        $region115: #{tpu_custom_call.1} parent=79 // pred_region
          %715 = dma.done [#allocation15], 2048
        $region116: #{tpu_custom_call.1} parent=79 // pred_fallthru
          _
        // Predicated region
        $region117: #{tpu_custom_call.1} parent=79 // pred_check
          %p716 = pneg %p273
        $region118: #{tpu_custom_call.1} parent=79 // pred_check_branch
          %718 = sbr.rel (%p716) target = $region120
        $region119: #{tpu_custom_call.1} parent=79 // pred_region
          %719 = dma.done [#allocation18], 2048
        $region120: #{tpu_custom_call.1} parent=79 // pred_fallthru
          _
        // Predicated region
        $region121: #{tpu_custom_call.1} parent=79 // pred_check
          %p720 = pneg %p294
        $region122: #{tpu_custom_call.1} parent=79 // pred_check_branch
          %722 = sbr.rel (%p720) target = $region124
        $region123: #{tpu_custom_call.1} parent=79 // pred_region
          %723 = dma.done [#allocation18], 32
        $region124: #{tpu_custom_call.1} parent=79 // pred_fallthru
          _
        // Predicated region
        $region125: #{tpu_custom_call.1} parent=79 // pred_check
          %p724 = pneg %p315
        $region126: #{tpu_custom_call.1} parent=79 // pred_check_branch
          %726 = sbr.rel (%p724) target = $region128
        $region127: #{tpu_custom_call.1} parent=79 // pred_region
          %727 = dma.done [#allocation21], 2048
        $region128: #{tpu_custom_call.1} parent=79 // pred_fallthru
          _
        // Predicated region
        $region129: #{tpu_custom_call.1} parent=79 // pred_check
          %p728 = pneg %p336
        $region130: #{tpu_custom_call.1} parent=79 // pred_check_branch
          %730 = sbr.rel (%p728) target = $region132
        $region131: #{tpu_custom_call.1} parent=79 // pred_region
          %731 = dma.done [#allocation21], 2048
        $region132: #{tpu_custom_call.1} parent=79 // pred_fallthru
          _
        // Predicated region
        $region133: #{tpu_custom_call.1} parent=79 // pred_check
          %p732 = pneg %p357
        $region134: #{tpu_custom_call.1} parent=79 // pred_check_branch
          %734 = sbr.rel (%p732) target = $region136
        $region135: #{tpu_custom_call.1} parent=79 // pred_region
          %735 = dma.done [#allocation24], 2048
        $region136: #{tpu_custom_call.1} parent=79 // pred_fallthru
          _
        // Predicated region
        $region137: #{tpu_custom_call.1} parent=79 // pred_check
          %p736 = pneg %p378
        $region138: #{tpu_custom_call.1} parent=79 // pred_check_branch
          %738 = sbr.rel (%p736) target = $region140
        $region139: #{tpu_custom_call.1} parent=79 // pred_region
          %739 = dma.done [#allocation24], 32
        $region140: #{tpu_custom_call.1} parent=79 // pred_fallthru
          _
        %s740 = sand.u32 %s56, 1
        %s741 = scalar_lea.sflag [#allocation3], %s740
        %s742 = sand.u32 %s56, 1
        %s743 = smul.addr %s742, 16
        %s744 = scalar_lea.vmem [#allocation2], %s743
        %p745 = pneg %p69
        %p746 = pneg %p66
        %s747 = sand.u32 %s48, 1
        %s748 = scalar_lea.sflag [#allocation6], %s747
        %s749 = sand.u32 %s82, 1
        %s750 = smul.addr %s749, 8
        %s751 = scalar_lea.vmem [#allocation5], %s750
        %p752 = pneg %p95
        %p753 = pneg %p92
        %s754 = sand.u32 %s48, 1
        %s755 = scalar_lea.sflag [#allocation6], %s754
        %s756 = sand.u32 %s108, 1
        %s757 = scalar_lea.vmem [#allocation7], %s756
        %p758 = pneg %p121
        %p759 = pneg %p118
        %s760 = sand.u32 %s48, 1
        %s761 = scalar_lea.sflag [#allocation9], %s760
        %s762 = sand.u32 %s134, 1
        %s763 = scalar_lea.vmem [#allocation8], %s762
        %p764 = pneg %p147
        %p765 = pneg %p144
        %p766 = pneg %p168
        %p767 = pneg %p165
        %p768 = pneg %p189
        %p769 = pneg %p186
        %p770 = pneg %p210
        %p771 = pneg %p207
        %p772 = pneg %p231
        %p773 = pneg %p228
        %p774 = pneg %p252
        %p775 = pneg %p249
        %p776 = pneg %p273
        %p777 = pneg %p270
        %p778 = pneg %p294
        %p779 = pneg %p291
        %p780 = pneg %p315
        %p781 = pneg %p312
        %p782 = pneg %p336
        %p783 = pneg %p333
        %p784 = pneg %p357
        %p785 = pneg %p354
        %p786 = pneg %p378
        %p787 = pneg %p375
        %p788 = pneg %p404
        %p789 = pneg %p401
        %s790 = sand.u32 %s391, 1
        %s791 = scalar_lea.sflag [#allocation4], %s790
        %s792 = sand.u32 %s391, 1
        %s793 = smul.addr %s792, 16
        %s794 = scalar_lea.vmem [#allocation26], %s793
        %p795 = pneg %p430
        %p796 = pneg %p427
        %s797 = sand.u32 %s417, 1
        %s798 = scalar_lea.sflag [#allocation28], %s797
        %s799 = sand.u32 %s417, 1
        %s800 = smul.addr %s799, 8
        %s801 = scalar_lea.vmem [#allocation27], %s800
        %v803 = vld [vmem:[%s666] sm:$0xff]
        %v804 = vld [vmem:[%s666 + $0x8] sm:$0xff]
        %v805 = vld [vmem:[%s675] sm:$0xff]
        %v806 = vld [vmem:[#allocation10] sm:$0x1]
        %v807 = vld [vmem:[#allocation11] sm:$0x1]
        %v808 = vld [vmem:[#allocation13] sm:$0x1]
        %v809 = vld [vmem:[%s691] sm:$0x1]
        %vm810 = vcmp.ne.f32.partialorder %v809, 0.0
        %v811 = vld [vmem:[%s683] sm:$0x1]
        %vm812 = vcmp.ne.f32.partialorder %v811, 0.0
        %v813 = vpack.c.bf16 %v804, %v803
        %v814 = vpack.c.bf16 %v805, %v805
        %v816 = vlaneseq
        %v817 = vshrl.u32 %v816, 7
        %v818 = vsub.s32 0, %v817
        %v819 = vrot.slane %v806, %v818
        %v821 = vmul.f32 %v803, %v819
        %v822 = vmul.f32 %v804, %v819
        %v824 = vlaneseq
        %v825 = vshrl.u32 %v824, 7
        %v826 = vsub.s32 0, %v825
        %v827 = vrot.slane %v808, %v826
        %v829 = vadd.f32 %v821, %v827
        %v830 = vadd.f32 %v822, %v827
        %v831 = vpack.c.bf16 %v830, %v829
        %832 = vmatprep.subr.bf16.mxu0 0
        %833 = vmatpush1.bf16.xpose.msra.mxu0 %v814
        %834 = vmatprep.subr.bf16.mxu0 0
        %835 = vmatpush1.bf16.xpose.msra.mxu0 0
        %836 = vmatprep.subr.bf16.mxu0 0
        %837 = vmatpush1.bf16.xpose.msra.mxu0 0
        %838 = vmatprep.subr.bf16.mxu0 0
        %839 = vmatpush1.bf16.xpose.msra.mxu0 0
        %840 = vmatprep.subr.bf16.mxu0 0
        %841 = vmatpush1.bf16.xpose.msra.mxu0 0
        %842 = vmatprep.subr.bf16.mxu0 0
        %843 = vmatpush1.bf16.xpose.msra.mxu0 0
        %844 = vmatprep.subr.bf16.mxu0 0
        %845 = vmatpush1.bf16.xpose.msra.mxu0 0
        %846 = vmatprep.subr.bf16.mxu0 0
        %847 = vmatpush1.bf16.xpose.msra.mxu0 0
        %848 = vmatprep.subr.bf16.mxu0 0
        %849 = vmatpush1.bf16.xpose.msra.mxu0 0
        %850 = vmatprep.subr.bf16.mxu0 0
        %851 = vmatpush1.bf16.xpose.msra.mxu0 0
        %852 = vmatprep.subr.bf16.mxu0 0
        %853 = vmatpush1.bf16.xpose.msra.mxu0 0
        %854 = vmatprep.subr.bf16.mxu0 0
        %855 = vmatpush1.bf16.xpose.msra.mxu0 0
        %856 = vmatprep.subr.bf16.mxu0 0
        %857 = vmatpush1.bf16.xpose.msra.mxu0 0
        %858 = vmatprep.subr.bf16.mxu0 0
        %859 = vmatpush1.bf16.xpose.msra.mxu0 0
        %860 = vmatprep.subr.bf16.mxu0 0
        %861 = vmatpush1.bf16.xpose.msra.mxu0 0
        %862 = vmatprep.subr.bf16.mxu0 0
        %863 = vmatpush1.bf16.xpose.msra.mxu0 0
        %864 = vmatprep.mubr.bf16.mxu0 0
        %865 = vmatmul.mubr.bf16.gmra.mrb[0].mxu0 %v831
        %v866 = vpop.f32.mrb[0].mxu0
        %v867 = vadd.f32 0.0, %v866
        %v868 = vpop.f32.mrb[0].mxu0
        %v869 = vpop.f32.mrb[0].mxu0
        %v870 = vadd.f32 0.0, %v869
        %v871 = vpop.f32.mrb[0].mxu0
        %872 = vdwg.mxu0
        %v873 = vsel %vm810, 1, 0
        %v874 = vlaneseq
        %v875 = vshrl.u32 %v874, 7
        %v876 = vsub.s32 0, %v875
        %v877 = vrot.slane %v873, %v876
        %vm878 = vcmp.eq.s32.totalorder %v877, 1
        %v879 = vsel %vm878, %v867, -1e+30
        %v880 = vsel %vm878, %v870, -1e+30
        %vm881 = vcmask 64512
        %v882 = vsel %vm881, %v879, -inf
        %883 = vmax.xlane.f32.xlu0 %v882
        %v884 = vpop.xlane.xlu0 %883
        %v885 = vsel %vm881, %v880, -inf
        %886 = vmax.xlane.f32.xlu0 %v885
        %v887 = vpop.xlane.xlu0 %886
        %v888 = vsub.f32 %v879, %v884
        %v889 = vsub.f32 %v880, %v887
        %v890 = vmul.f32 %v888, 1.442695
        %v891 = vpow.pop %v890
        %v892 = vmul.f32 %v889, 1.442695
        %v893 = vpow.pop %v892
        %v894 = vsel %vm881, %v891, 0.0
        %895 = vadd.xlane.f32.xlu0 %v894
        %v896 = vpop.xlane.xlu0 %895
        %v897 = vsel %vm881, %v893, 0.0
        %898 = vadd.xlane.f32.xlu0 %v897
        %v899 = vpop.xlane.xlu0 %898
        %v900 = vrcp.pop %v896
        %v901 = vrcp.pop %v899
        %v902 = vmul.f32 %v891, %v900
        %v903 = vmul.f32 %v893, %v901
        %v904 = vpack.c.bf16 %v903, %v902
        %v906 = vsel %vm881, %v904, 0
        %vm908 = vcmask 1043456
        %v910 = vsel %vm908, %v814, 0
        %912 = vmatprep.subr.bf16.mxu0 0
        %913 = vmatpush1.bf16.msra.mxu0 %v910
        %914 = vmatprep.subr.bf16.mxu0 0
        %915 = vmatpush1.bf16.msra.mxu0 0
        %916 = vmatprep.subr.bf16.mxu0 0
        %917 = vmatpush1.bf16.msra.mxu0 0
        %918 = vmatprep.subr.bf16.mxu0 0
        %919 = vmatpush1.bf16.msra.mxu0 0
        %920 = vmatprep.subr.bf16.mxu0 0
        %921 = vmatpush1.bf16.msra.mxu0 0
        %922 = vmatprep.subr.bf16.mxu0 0
        %923 = vmatpush1.bf16.msra.mxu0 0
        %924 = vmatprep.subr.bf16.mxu0 0
        %925 = vmatpush1.bf16.msra.mxu0 0
        %926 = vmatprep.subr.bf16.mxu0 0
        %927 = vmatpush1.bf16.msra.mxu0 0
        %928 = vmatprep.subr.bf16.mxu0 0
        %929 = vmatpush1.bf16.msra.mxu0 0
        %930 = vmatprep.subr.bf16.mxu0 0
        %931 = vmatpush1.bf16.msra.mxu0 0
        %932 = vmatprep.subr.bf16.mxu0 0
        %933 = vmatpush1.bf16.msra.mxu0 0
        %934 = vmatprep.subr.bf16.mxu0 0
        %935 = vmatpush1.bf16.msra.mxu0 0
        %936 = vmatprep.subr.bf16.mxu0 0
        %937 = vmatpush1.bf16.msra.mxu0 0
        %938 = vmatprep.subr.bf16.mxu0 0
        %939 = vmatpush1.bf16.msra.mxu0 0
        %940 = vmatprep.subr.bf16.mxu0 0
        %941 = vmatpush1.bf16.msra.mxu0 0
        %942 = vmatprep.subr.bf16.mxu0 0
        %943 = vmatpush1.bf16.msra.mxu0 0
        %944 = vmatprep.mubr.bf16.mxu0 0
        %945 = vmatmul.mubr.bf16.gmra.mrb[0].mxu0 %v906
        %v946 = vpop.f32.mrb[0].mxu0
        %v947 = vadd.f32 0.0, %v946
        %v948 = vpop.f32.mrb[0].mxu0
        %v949 = vpop.f32.mrb[0].mxu0
        %v950 = vadd.f32 0.0, %v949
        %v951 = vpop.f32.mrb[0].mxu0
        %952 = vdwg.mxu0
        %v953 = vld [vmem:[#allocation14] sm:$0xff]
        %v954 = vld [vmem:[#allocation14 + $0x8] sm:$0xff]
        %v955 = vld [vmem:[#allocation14 + $0x10] sm:$0xff]
        %v956 = vld [vmem:[#allocation14 + $0x18] sm:$0xff]
        %v957 = vld [vmem:[#allocation14 + $0x20] sm:$0xff]
        %v958 = vld [vmem:[#allocation14 + $0x28] sm:$0xff]
        %v959 = vld [vmem:[#allocation14 + $0x30] sm:$0xff]
        %v960 = vld [vmem:[#allocation14 + $0x38] sm:$0xff]
        %v961 = vld [vmem:[#allocation14 + $0x40] sm:$0xff]
        %v962 = vld [vmem:[#allocation14 + $0x48] sm:$0xff]
        %v963 = vld [vmem:[#allocation14 + $0x50] sm:$0xff]
        %v964 = vld [vmem:[#allocation14 + $0x58] sm:$0xff]
        %v965 = vld [vmem:[#allocation14 + $0x60] sm:$0xff]
        %v966 = vld [vmem:[#allocation14 + $0x68] sm:$0xff]
        %v967 = vld [vmem:[#allocation14 + $0x70] sm:$0xff]
        %v968 = vld [vmem:[#allocation14 + $0x78] sm:$0xff]
        %v969 = vld [vmem:[#allocation16] sm:$0xff]
        %v970 = vld [vmem:[#allocation16 + $0x8] sm:$0xff]
        %v971 = vld [vmem:[#allocation16 + $0x10] sm:$0xff]
        %v972 = vld [vmem:[#allocation16 + $0x18] sm:$0xff]
        %v973 = vld [vmem:[#allocation16 + $0x20] sm:$0xff]
        %v974 = vld [vmem:[#allocation16 + $0x28] sm:$0xff]
        %v975 = vld [vmem:[#allocation16 + $0x30] sm:$0xff]
        %v976 = vld [vmem:[#allocation16 + $0x38] sm:$0xff]
        %v977 = vld [vmem:[#allocation16 + $0x40] sm:$0xff]
        %v978 = vld [vmem:[#allocation16 + $0x48] sm:$0xff]
        %v979 = vld [vmem:[#allocation16 + $0x50] sm:$0xff]
        %v980 = vld [vmem:[#allocation16 + $0x58] sm:$0xff]
        %v981 = vld [vmem:[#allocation16 + $0x60] sm:$0xff]
        %v982 = vld [vmem:[#allocation16 + $0x68] sm:$0xff]
        %v983 = vld [vmem:[#allocation16 + $0x70] sm:$0xff]
        %v984 = vld [vmem:[#allocation16 + $0x78] sm:$0xff]
        %v985 = vld [vmem:[#allocation17] sm:$0xff]
        %v986 = vld [vmem:[#allocation17 + $0x8] sm:$0xff]
        %v987 = vld [vmem:[#allocation17 + $0x10] sm:$0xff]
        %v988 = vld [vmem:[#allocation17 + $0x18] sm:$0xff]
        %v989 = vld [vmem:[#allocation17 + $0x20] sm:$0xff]
        %v990 = vld [vmem:[#allocation17 + $0x28] sm:$0xff]
        %v991 = vld [vmem:[#allocation17 + $0x30] sm:$0xff]
        %v992 = vld [vmem:[#allocation17 + $0x38] sm:$0xff]
        %v993 = vld [vmem:[#allocation17 + $0x40] sm:$0xff]
        %v994 = vld [vmem:[#allocation17 + $0x48] sm:$0xff]
        %v995 = vld [vmem:[#allocation17 + $0x50] sm:$0xff]
        %v996 = vld [vmem:[#allocation17 + $0x58] sm:$0xff]
        %v997 = vld [vmem:[#allocation17 + $0x60] sm:$0xff]
        %v998 = vld [vmem:[#allocation17 + $0x68] sm:$0xff]
        %v999 = vld [vmem:[#allocation17 + $0x70] sm:$0xff]
        %v1000 = vld [vmem:[#allocation17 + $0x78] sm:$0xff]
        %v1001 = vld [vmem:[#allocation19] sm:$0x3]
        %v1002 = vpack.c.bf16 %v950, %v947
        %v1019 = vunpack.c.l.b16 %v969
        %v1020 = vunpack.c.h.b16 %v969
        %v1021 = vunpack.c.l.b16 %v970
        %v1022 = vunpack.c.h.b16 %v970
        %v1023 = vunpack.c.l.b16 %v971
        %v1024 = vunpack.c.h.b16 %v971
        %v1025 = vunpack.c.l.b16 %v972
        %v1026 = vunpack.c.h.b16 %v972
        %v1027 = vunpack.c.l.b16 %v973
        %v1028 = vunpack.c.h.b16 %v973
        %v1029 = vunpack.c.l.b16 %v974
        %v1030 = vunpack.c.h.b16 %v974
        %v1031 = vunpack.c.l.b16 %v975
        %v1032 = vunpack.c.h.b16 %v975
        %v1033 = vunpack.c.l.b16 %v976
        %v1034 = vunpack.c.h.b16 %v976
        %v1035 = vunpack.c.l.b16 %v977
        %v1036 = vunpack.c.h.b16 %v977
        %v1037 = vunpack.c.l.b16 %v978
        %v1038 = vunpack.c.h.b16 %v978
        %v1039 = vunpack.c.l.b16 %v979
        %v1040 = vunpack.c.h.b16 %v979
        %v1041 = vunpack.c.l.b16 %v980
        %v1042 = vunpack.c.h.b16 %v980
        %v1043 = vunpack.c.l.b16 %v981
        %v1044 = vunpack.c.h.b16 %v981
        %v1045 = vunpack.c.l.b16 %v982
        %v1046 = vunpack.c.h.b16 %v982
        %v1047 = vunpack.c.l.b16 %v983
        %v1048 = vunpack.c.h.b16 %v983
        %v1049 = vunpack.c.l.b16 %v984
        %v1050 = vunpack.c.h.b16 %v984
        %v1051 = vpack.c.b16 %v1021, %v1019
        %v1052 = vpack.c.b16 %v1022, %v1020
        %v1053 = vpack.c.b16 %v1025, %v1023
        %v1054 = vpack.c.b16 %v1026, %v1024
        %v1055 = vpack.c.b16 %v1029, %v1027
        %v1056 = vpack.c.b16 %v1030, %v1028
        %v1057 = vpack.c.b16 %v1033, %v1031
        %v1058 = vpack.c.b16 %v1034, %v1032
        %v1059 = vpack.c.b16 %v1037, %v1035
        %v1060 = vpack.c.b16 %v1038, %v1036
        %v1061 = vpack.c.b16 %v1041, %v1039
        %v1062 = vpack.c.b16 %v1042, %v1040
        %v1063 = vpack.c.b16 %v1045, %v1043
        %v1064 = vpack.c.b16 %v1046, %v1044
        %v1065 = vpack.c.b16 %v1049, %v1047
        %v1066 = vpack.c.b16 %v1050, %v1048
        %1083 = vmatprep.subr.bf16.mxu0 %v1052
        %1084 = vmatpush1.bf16.msra.mxu0 %v1051
        %1085 = vmatprep.subr.bf16.mxu0 %v1054
        %1086 = vmatpush1.bf16.msra.mxu0 %v1053
        %1087 = vmatprep.subr.bf16.mxu0 %v1056
        %1088 = vmatpush1.bf16.msra.mxu0 %v1055
        %1089 = vmatprep.subr.bf16.mxu0 %v1058
        %1090 = vmatpush1.bf16.msra.mxu0 %v1057
        %1091 = vmatprep.subr.bf16.mxu0 %v1060
        %1092 = vmatpush1.bf16.msra.mxu0 %v1059
        %1093 = vmatprep.subr.bf16.mxu0 %v1062
        %1094 = vmatpush1.bf16.msra.mxu0 %v1061
        %1095 = vmatprep.subr.bf16.mxu0 %v1064
        %1096 = vmatpush1.bf16.msra.mxu0 %v1063
        %1097 = vmatprep.subr.bf16.mxu0 %v1066
        %1098 = vmatpush1.bf16.msra.mxu0 %v1065
        %1099 = vmatprep.subr.bf16.mxu0 0
        %1100 = vmatpush1.bf16.msra.mxu0 0
        %1101 = vmatprep.subr.bf16.mxu0 0
        %1102 = vmatpush1.bf16.msra.mxu0 0
        %1103 = vmatprep.subr.bf16.mxu0 0
        %1104 = vmatpush1.bf16.msra.mxu0 0
        %1105 = vmatprep.subr.bf16.mxu0 0
        %1106 = vmatpush1.bf16.msra.mxu0 0
        %1107 = vmatprep.subr.bf16.mxu0 0
        %1108 = vmatpush1.bf16.msra.mxu0 0
        %1109 = vmatprep.subr.bf16.mxu0 0
        %1110 = vmatpush1.bf16.msra.mxu0 0
        %1111 = vmatprep.subr.bf16.mxu0 0
        %1112 = vmatpush1.bf16.msra.mxu0 0
        %1113 = vmatprep.subr.bf16.mxu0 0
        %1114 = vmatpush1.bf16.msra.mxu0 0
        %1115 = vmatprep.mubr.bf16.mxu0 0
        %1116 = vmatmul.mubr.bf16.gmra.mrb[0].mxu0 %v1002
        %v1117 = vpop.f32.mrb[0].mxu0
        %v1118 = vadd.f32 0.0, %v1117
        %v1119 = vpop.f32.mrb[0].mxu0
        %v1120 = vadd.f32 0.0, %v1119
        %v1121 = vpop.f32.mrb[0].mxu0
        %v1122 = vadd.f32 0.0, %v1121
        %v1123 = vpop.f32.mrb[0].mxu0
        %v1124 = vadd.f32 0.0, %v1123
        %1125 = vdwg.mxu0
        %v1142 = vunpack.c.l.b16 %v953
        %v1143 = vunpack.c.h.b16 %v953
        %v1144 = vunpack.c.l.b16 %v954
        %v1145 = vunpack.c.h.b16 %v954
        %v1146 = vunpack.c.l.b16 %v955
        %v1147 = vunpack.c.h.b16 %v955
        %v1148 = vunpack.c.l.b16 %v956
        %v1149 = vunpack.c.h.b16 %v956
        %v1150 = vunpack.c.l.b16 %v957
        %v1151 = vunpack.c.h.b16 %v957
        %v1152 = vunpack.c.l.b16 %v958
        %v1153 = vunpack.c.h.b16 %v958
        %v1154 = vunpack.c.l.b16 %v959
        %v1155 = vunpack.c.h.b16 %v959
        %v1156 = vunpack.c.l.b16 %v960
        %v1157 = vunpack.c.h.b16 %v960
        %v1158 = vunpack.c.l.b16 %v961
        %v1159 = vunpack.c.h.b16 %v961
        %v1160 = vunpack.c.l.b16 %v962
        %v1161 = vunpack.c.h.b16 %v962
        %v1162 = vunpack.c.l.b16 %v963
        %v1163 = vunpack.c.h.b16 %v963
        %v1164 = vunpack.c.l.b16 %v964
        %v1165 = vunpack.c.h.b16 %v964
        %v1166 = vunpack.c.l.b16 %v965
        %v1167 = vunpack.c.h.b16 %v965
        %v1168 = vunpack.c.l.b16 %v966
        %v1169 = vunpack.c.h.b16 %v966
        %v1170 = vunpack.c.l.b16 %v967
        %v1171 = vunpack.c.h.b16 %v967
        %v1172 = vunpack.c.l.b16 %v968
        %v1173 = vunpack.c.h.b16 %v968
        %v1174 = vpack.c.b16 %v1144, %v1142
        %v1175 = vpack.c.b16 %v1145, %v1143
        %v1176 = vpack.c.b16 %v1148, %v1146
        %v1177 = vpack.c.b16 %v1149, %v1147
        %v1178 = vpack.c.b16 %v1152, %v1150
        %v1179 = vpack.c.b16 %v1153, %v1151
        %v1180 = vpack.c.b16 %v1156, %v1154
        %v1181 = vpack.c.b16 %v1157, %v1155
        %v1182 = vpack.c.b16 %v1160, %v1158
        %v1183 = vpack.c.b16 %v1161, %v1159
        %v1184 = vpack.c.b16 %v1164, %v1162
        %v1185 = vpack.c.b16 %v1165, %v1163
        %v1186 = vpack.c.b16 %v1168, %v1166
        %v1187 = vpack.c.b16 %v1169, %v1167
        %v1188 = vpack.c.b16 %v1172, %v1170
        %v1189 = vpack.c.b16 %v1173, %v1171
        %1206 = vmatprep.subr.bf16.mxu0 %v1175
        %1207 = vmatpush1.bf16.msra.mxu0 %v1174
        %1208 = vmatprep.subr.bf16.mxu0 %v1177
        %1209 = vmatpush1.bf16.msra.mxu0 %v1176
        %1210 = vmatprep.subr.bf16.mxu0 %v1179
        %1211 = vmatpush1.bf16.msra.mxu0 %v1178
        %1212 = vmatprep.subr.bf16.mxu0 %v1181
        %1213 = vmatpush1.bf16.msra.mxu0 %v1180
        %1214 = vmatprep.subr.bf16.mxu0 %v1183
        %1215 = vmatpush1.bf16.msra.mxu0 %v1182
        %1216 = vmatprep.subr.bf16.mxu0 %v1185
        %1217 = vmatpush1.bf16.msra.mxu0 %v1184
        %1218 = vmatprep.subr.bf16.mxu0 %v1187
        %1219 = vmatpush1.bf16.msra.mxu0 %v1186
        %1220 = vmatprep.subr.bf16.mxu0 %v1189
        %1221 = vmatpush1.bf16.msra.mxu0 %v1188
        %1222 = vmatprep.subr.bf16.mxu0 0
        %1223 = vmatpush1.bf16.msra.mxu0 0
        %1224 = vmatprep.subr.bf16.mxu0 0
        %1225 = vmatpush1.bf16.msra.mxu0 0
        %1226 = vmatprep.subr.bf16.mxu0 0
        %1227 = vmatpush1.bf16.msra.mxu0 0
        %1228 = vmatprep.subr.bf16.mxu0 0
        %1229 = vmatpush1.bf16.msra.mxu0 0
        %1230 = vmatprep.subr.bf16.mxu0 0
        %1231 = vmatpush1.bf16.msra.mxu0 0
        %1232 = vmatprep.subr.bf16.mxu0 0
        %1233 = vmatpush1.bf16.msra.mxu0 0
        %1234 = vmatprep.subr.bf16.mxu0 0
        %1235 = vmatpush1.bf16.msra.mxu0 0
        %1236 = vmatprep.subr.bf16.mxu0 0
        %1237 = vmatpush1.bf16.msra.mxu0 0
        %1238 = vmatprep.mubr.bf16.mxu0 0
        %1239 = vmatmul.mubr.bf16.gmra.mrb[0].mxu0 %v813
        %v1240 = vpop.f32.mrb[0].mxu0
        %v1241 = vadd.f32 %v1118, %v1240
        %v1242 = vpop.f32.mrb[0].mxu0
        %v1243 = vadd.f32 %v1120, %v1242
        %v1244 = vpop.f32.mrb[0].mxu0
        %v1245 = vadd.f32 %v1122, %v1244
        %v1246 = vpop.f32.mrb[0].mxu0
        %v1247 = vadd.f32 %v1124, %v1246
        %1248 = vdwg.mxu0
        %v1249 = vmul.f32 %v803, %v947
        %v1250 = vmul.f32 %v804, %v950
        %v1251 = vpack.c.bf16 %v1250, %v1249
        %v1268 = vunpack.c.l.b16 %v985
        %v1269 = vunpack.c.h.b16 %v985
        %v1270 = vunpack.c.l.b16 %v986
        %v1271 = vunpack.c.h.b16 %v986
        %v1272 = vunpack.c.l.b16 %v987
        %v1273 = vunpack.c.h.b16 %v987
        %v1274 = vunpack.c.l.b16 %v988
        %v1275 = vunpack.c.h.b16 %v988
        %v1276 = vunpack.c.l.b16 %v989
        %v1277 = vunpack.c.h.b16 %v989
        %v1278 = vunpack.c.l.b16 %v990
        %v1279 = vunpack.c.h.b16 %v990
        %v1280 = vunpack.c.l.b16 %v991
        %v1281 = vunpack.c.h.b16 %v991
        %v1282 = vunpack.c.l.b16 %v992
        %v1283 = vunpack.c.h.b16 %v992
        %v1284 = vunpack.c.l.b16 %v993
        %v1285 = vunpack.c.h.b16 %v993
        %v1286 = vunpack.c.l.b16 %v994
        %v1287 = vunpack.c.h.b16 %v994
        %v1288 = vunpack.c.l.b16 %v995
        %v1289 = vunpack.c.h.b16 %v995
        %v1290 = vunpack.c.l.b16 %v996
        %v1291 = vunpack.c.h.b16 %v996
        %v1292 = vunpack.c.l.b16 %v997
        %v1293 = vunpack.c.h.b16 %v997
        %v1294 = vunpack.c.l.b16 %v998
        %v1295 = vunpack.c.h.b16 %v998
        %v1296 = vunpack.c.l.b16 %v999
        %v1297 = vunpack.c.h.b16 %v999
        %v1298 = vunpack.c.l.b16 %v1000
        %v1299 = vunpack.c.h.b16 %v1000
        %v1300 = vpack.c.b16 %v1270, %v1268
        %v1301 = vpack.c.b16 %v1271, %v1269
        %v1302 = vpack.c.b16 %v1274, %v1272
        %v1303 = vpack.c.b16 %v1275, %v1273
        %v1304 = vpack.c.b16 %v1278, %v1276
        %v1305 = vpack.c.b16 %v1279, %v1277
        %v1306 = vpack.c.b16 %v1282, %v1280
        %v1307 = vpack.c.b16 %v1283, %v1281
        %v1308 = vpack.c.b16 %v1286, %v1284
        %v1309 = vpack.c.b16 %v1287, %v1285
        %v1310 = vpack.c.b16 %v1290, %v1288
        %v1311 = vpack.c.b16 %v1291, %v1289
        %v1312 = vpack.c.b16 %v1294, %v1292
        %v1313 = vpack.c.b16 %v1295, %v1293
        %v1314 = vpack.c.b16 %v1298, %v1296
        %v1315 = vpack.c.b16 %v1299, %v1297
        %1332 = vmatprep.subr.bf16.mxu0 %v1301
        %1333 = vmatpush1.bf16.msra.mxu0 %v1300
        %1334 = vmatprep.subr.bf16.mxu0 %v1303
        %1335 = vmatpush1.bf16.msra.mxu0 %v1302
        %1336 = vmatprep.subr.bf16.mxu0 %v1305
        %1337 = vmatpush1.bf16.msra.mxu0 %v1304
        %1338 = vmatprep.subr.bf16.mxu0 %v1307
        %1339 = vmatpush1.bf16.msra.mxu0 %v1306
        %1340 = vmatprep.subr.bf16.mxu0 %v1309
        %1341 = vmatpush1.bf16.msra.mxu0 %v1308
        %1342 = vmatprep.subr.bf16.mxu0 %v1311
        %1343 = vmatpush1.bf16.msra.mxu0 %v1310
        %1344 = vmatprep.subr.bf16.mxu0 %v1313
        %1345 = vmatpush1.bf16.msra.mxu0 %v1312
        %1346 = vmatprep.subr.bf16.mxu0 %v1315
        %1347 = vmatpush1.bf16.msra.mxu0 %v1314
        %1348 = vmatprep.subr.bf16.mxu0 0
        %1349 = vmatpush1.bf16.msra.mxu0 0
        %1350 = vmatprep.subr.bf16.mxu0 0
        %1351 = vmatpush1.bf16.msra.mxu0 0
        %1352 = vmatprep.subr.bf16.mxu0 0
        %1353 = vmatpush1.bf16.msra.mxu0 0
        %1354 = vmatprep.subr.bf16.mxu0 0
        %1355 = vmatpush1.bf16.msra.mxu0 0
        %1356 = vmatprep.subr.bf16.mxu0 0
        %1357 = vmatpush1.bf16.msra.mxu0 0
        %1358 = vmatprep.subr.bf16.mxu0 0
        %1359 = vmatpush1.bf16.msra.mxu0 0
        %1360 = vmatprep.subr.bf16.mxu0 0
        %1361 = vmatpush1.bf16.msra.mxu0 0
        %1362 = vmatprep.subr.bf16.mxu0 0
        %1363 = vmatpush1.bf16.msra.mxu0 0
        %1364 = vmatprep.mubr.bf16.mxu0 0
        %1365 = vmatmul.mubr.bf16.gmra.mrb[0].mxu0 %v1251
        %v1366 = vpop.f32.mrb[0].mxu0
        %v1367 = vadd.f32 0.0, %v1366
        %v1368 = vpop.f32.mrb[0].mxu0
        %v1369 = vadd.f32 0.0, %v1368
        %v1370 = vpop.f32.mrb[0].mxu0
        %v1371 = vadd.f32 0.0, %v1370
        %v1372 = vpop.f32.mrb[0].mxu0
        %v1373 = vadd.f32 0.0, %v1372
        %1374 = vdwg.mxu0
        %v1375 = vadd.f32 %v1241, %v1367
        %v1376 = vadd.f32 %v1243, %v1369
        %v1377 = vadd.f32 %v1245, %v1371
        %v1378 = vadd.f32 %v1247, %v1373
        %v1380 = vlaneseq
        %v1381 = vshrl.u32 %v1380, 7
        %v1382 = vsub.s32 0, %v1381
        %v1383 = vrot.slane %v1001, %v1382
        %v1384 = vlaneseq
        %v1385 = vshrl.u32 %v1384, 7
        %v1386 = vsub.s32 1, %v1385
        %v1387 = vrot.slane %v1001, %v1386
        %v1390 = vadd.f32 %v1375, %v1383
        %v1391 = vadd.f32 %v1376, %v1387
        %v1392 = vadd.f32 %v1377, %v1383
        %v1393 = vadd.f32 %v1378, %v1387
        %v1394 = vtanh.pop %v1390
        %v1395 = vtanh.pop %v1392
        %v1396 = vxor.u32 %v1391, 2147483648
        %v1397 = vxor.u32 %v1393, 2147483648
        %v1398 = vmul.f32 %v1396, 1.442695
        %v1399 = vpow.pop %v1398
        %v1400 = vmul.f32 %v1397, 1.442695
        %v1401 = vpow.pop %v1400
        %v1402 = vadd.f32 %v1399, 1.0
        %v1403 = vadd.f32 %v1401, 1.0
        %v1404 = vrcp.pop %v1402
        %v1405 = vmul.f32 1.0, %v1404
        %v1406 = vrcp.pop %v1403
        %v1407 = vmul.f32 1.0, %v1406
        %v1408 = vmul.f32 %v1405, %v1394
        %v1409 = vmul.f32 %v1407, %v1395
        %v1410 = vsub.f32 1.0, %v1405
        %v1411 = vsub.f32 1.0, %v1407
        %v1412 = vmul.f32 %v1410, %v803
        %v1413 = vmul.f32 %v1411, %v804
        %v1414 = vadd.f32 %v1408, %v1412
        %v1415 = vadd.f32 %v1409, %v1413
        %1416 = vst [vmem:[%s794] sm:$0xff] %v1414
        %1417 = vst [vmem:[%s794 + $0x8] sm:$0xff] %v1415
        %v1418 = vmul.f32 %v805, %v819
        %v1420 = vlaneseq
        %v1421 = vshrl.u32 %v1420, 7
        %v1422 = vsub.s32 0, %v1421
        %v1423 = vrot.slane %v807, %v1422
        %v1425 = vadd.f32 %v1418, %v1423
        %v1426 = vpack.c.bf16 %v1425, %v1425
        %1427 = vmatprep.subr.bf16.mxu0 0
        %1428 = vmatpush1.bf16.xpose.msra.mxu0 %v813
        %1429 = vmatprep.subr.bf16.mxu0 0
        %1430 = vmatpush1.bf16.xpose.msra.mxu0 0
        %1431 = vmatprep.subr.bf16.mxu0 0
        %1432 = vmatpush1.bf16.xpose.msra.mxu0 0
        %1433 = vmatprep.subr.bf16.mxu0 0
        %1434 = vmatpush1.bf16.xpose.msra.mxu0 0
        %1435 = vmatprep.subr.bf16.mxu0 0
        %1436 = vmatpush1.bf16.xpose.msra.mxu0 0
        %1437 = vmatprep.subr.bf16.mxu0 0
        %1438 = vmatpush1.bf16.xpose.msra.mxu0 0
        %1439 = vmatprep.subr.bf16.mxu0 0
        %1440 = vmatpush1.bf16.xpose.msra.mxu0 0
        %1441 = vmatprep.subr.bf16.mxu0 0
        %1442 = vmatpush1.bf16.xpose.msra.mxu0 0
        %1443 = vmatprep.subr.bf16.mxu0 0
        %1444 = vmatpush1.bf16.xpose.msra.mxu0 0
        %1445 = vmatprep.subr.bf16.mxu0 0
        %1446 = vmatpush1.bf16.xpose.msra.mxu0 0
        %1447 = vmatprep.subr.bf16.mxu0 0
        %1448 = vmatpush1.bf16.xpose.msra.mxu0 0
        %1449 = vmatprep.subr.bf16.mxu0 0
        %1450 = vmatpush1.bf16.xpose.msra.mxu0 0
        %1451 = vmatprep.subr.bf16.mxu0 0
        %1452 = vmatpush1.bf16.xpose.msra.mxu0 0
        %1453 = vmatprep.subr.bf16.mxu0 0
        %1454 = vmatpush1.bf16.xpose.msra.mxu0 0
        %1455 = vmatprep.subr.bf16.mxu0 0
        %1456 = vmatpush1.bf16.xpose.msra.mxu0 0
        %1457 = vmatprep.subr.bf16.mxu0 0
        %1458 = vmatpush1.bf16.xpose.msra.mxu0 0
        %1459 = vmatprep.mubr.bf16.mxu0 0
        %1460 = vmatmul.mubr.bf16.gmra.mrb[0].mxu0 %v1426
        %v1461 = vpop.f32.mrb[0].mxu0
        %v1462 = vadd.f32 0.0, %v1461
        %v1463 = vpop.f32.mrb[0].mxu0
        %v1464 = vpop.f32.mrb[0].mxu0
        %v1465 = vpop.f32.mrb[0].mxu0
        %1466 = vdwg.mxu0
        %v1467 = vsel %vm812, 1, 0
        %v1468 = vlaneseq
        %v1469 = vshrl.u32 %v1468, 7
        %v1470 = vsub.s32 0, %v1469
        %v1471 = vrot.slane %v1467, %v1470
        %vm1472 = vcmp.eq.s32.totalorder %v1471, 1
        %v1473 = vsel %vm1472, %v1462, -1e+30
        %vm1474 = vcmask 130048
        %v1475 = vsel %vm1474, %v1473, -inf
        %1476 = vmax.xlane.f32.xlu0 %v1475
        %v1477 = vpop.xlane.xlu0 %1476
        %v1478 = vsub.f32 %v1473, %v1477
        %v1479 = vmul.f32 %v1478, 1.442695
        %v1480 = vpow.pop %v1479
        %v1481 = vsel %vm1474, %v1480, 0.0
        %1482 = vadd.xlane.f32.xlu0 %v1481
        %v1483 = vpop.xlane.xlu0 %1482
        %v1484 = vrcp.pop %v1483
        %v1485 = vmul.f32 %v1480, %v1484
        %v1486 = vpack.c.bf16 %v1485, %v1485
        %v1488 = vsel %vm1474, %v1486, 0
        %1490 = vmatprep.subr.bf16.mxu0 0
        %1491 = vmatpush1.bf16.msra.mxu0 %v813
        %1492 = vmatprep.subr.bf16.mxu0 0
        %1493 = vmatpush1.bf16.msra.mxu0 0
        %1494 = vmatprep.subr.bf16.mxu0 0
        %1495 = vmatpush1.bf16.msra.mxu0 0
        %1496 = vmatprep.subr.bf16.mxu0 0
        %1497 = vmatpush1.bf16.msra.mxu0 0
        %1498 = vmatprep.subr.bf16.mxu0 0
        %1499 = vmatpush1.bf16.msra.mxu0 0
        %1500 = vmatprep.subr.bf16.mxu0 0
        %1501 = vmatpush1.bf16.msra.mxu0 0
        %1502 = vmatprep.subr.bf16.mxu0 0
        %1503 = vmatpush1.bf16.msra.mxu0 0
        %1504 = vmatprep.subr.bf16.mxu0 0
        %1505 = vmatpush1.bf16.msra.mxu0 0
        %1506 = vmatprep.subr.bf16.mxu0 0
        %1507 = vmatpush1.bf16.msra.mxu0 0
        %1508 = vmatprep.subr.bf16.mxu0 0
        %1509 = vmatpush1.bf16.msra.mxu0 0
        %1510 = vmatprep.subr.bf16.mxu0 0
        %1511 = vmatpush1.bf16.msra.mxu0 0
        %1512 = vmatprep.subr.bf16.mxu0 0
        %1513 = vmatpush1.bf16.msra.mxu0 0
        %1514 = vmatprep.subr.bf16.mxu0 0
        %1515 = vmatpush1.bf16.msra.mxu0 0
        %1516 = vmatprep.subr.bf16.mxu0 0
        %1517 = vmatpush1.bf16.msra.mxu0 0
        %1518 = vmatprep.subr.bf16.mxu0 0
        %1519 = vmatpush1.bf16.msra.mxu0 0
        %1520 = vmatprep.subr.bf16.mxu0 0
        %1521 = vmatpush1.bf16.msra.mxu0 0
        %1522 = vmatprep.mubr.bf16.mxu0 0
        %1523 = vmatmul.mubr.bf16.gmra.mrb[0].mxu0 %v1488
        %v1524 = vpop.f32.mrb[0].mxu0
        %v1525 = vadd.f32 0.0, %v1524
        %v1526 = vpop.f32.mrb[0].mxu0
        %v1527 = vpop.f32.mrb[0].mxu0
        %v1528 = vpop.f32.mrb[0].mxu0
        %1529 = vdwg.mxu0
        %v1530 = vld [vmem:[#allocation20] sm:$0xff]
        %v1531 = vld [vmem:[#allocation20 + $0x8] sm:$0xff]
        %v1532 = vld [vmem:[#allocation20 + $0x10] sm:$0xff]
        %v1533 = vld [vmem:[#allocation20 + $0x18] sm:$0xff]
        %v1534 = vld [vmem:[#allocation20 + $0x20] sm:$0xff]
        %v1535 = vld [vmem:[#allocation20 + $0x28] sm:$0xff]
        %v1536 = vld [vmem:[#allocation20 + $0x30] sm:$0xff]
        %v1537 = vld [vmem:[#allocation20 + $0x38] sm:$0xff]
        %v1538 = vld [vmem:[#allocation20 + $0x40] sm:$0xff]
        %v1539 = vld [vmem:[#allocation20 + $0x48] sm:$0xff]
        %v1540 = vld [vmem:[#allocation20 + $0x50] sm:$0xff]
        %v1541 = vld [vmem:[#allocation20 + $0x58] sm:$0xff]
        %v1542 = vld [vmem:[#allocation20 + $0x60] sm:$0xff]
        %v1543 = vld [vmem:[#allocation20 + $0x68] sm:$0xff]
        %v1544 = vld [vmem:[#allocation20 + $0x70] sm:$0xff]
        %v1545 = vld [vmem:[#allocation20 + $0x78] sm:$0xff]
        %v1546 = vld [vmem:[#allocation22] sm:$0xff]
        %v1547 = vld [vmem:[#allocation22 + $0x8] sm:$0xff]
        %v1548 = vld [vmem:[#allocation22 + $0x10] sm:$0xff]
        %v1549 = vld [vmem:[#allocation22 + $0x18] sm:$0xff]
        %v1550 = vld [vmem:[#allocation22 + $0x20] sm:$0xff]
        %v1551 = vld [vmem:[#allocation22 + $0x28] sm:$0xff]
        %v1552 = vld [vmem:[#allocation22 + $0x30] sm:$0xff]
        %v1553 = vld [vmem:[#allocation22 + $0x38] sm:$0xff]
        %v1554 = vld [vmem:[#allocation22 + $0x40] sm:$0xff]
        %v1555 = vld [vmem:[#allocation22 + $0x48] sm:$0xff]
        %v1556 = vld [vmem:[#allocation22 + $0x50] sm:$0xff]
        %v1557 = vld [vmem:[#allocation22 + $0x58] sm:$0xff]
        %v1558 = vld [vmem:[#allocation22 + $0x60] sm:$0xff]
        %v1559 = vld [vmem:[#allocation22 + $0x68] sm:$0xff]
        %v1560 = vld [vmem:[#allocation22 + $0x70] sm:$0xff]
        %v1561 = vld [vmem:[#allocation22 + $0x78] sm:$0xff]
        %v1562 = vld [vmem:[#allocation23] sm:$0xff]
        %v1563 = vld [vmem:[#allocation23 + $0x8] sm:$0xff]
        %v1564 = vld [vmem:[#allocation23 + $0x10] sm:$0xff]
        %v1565 = vld [vmem:[#allocation23 + $0x18] sm:$0xff]
        %v1566 = vld [vmem:[#allocation23 + $0x20] sm:$0xff]
        %v1567 = vld [vmem:[#allocation23 + $0x28] sm:$0xff]
        %v1568 = vld [vmem:[#allocation23 + $0x30] sm:$0xff]
        %v1569 = vld [vmem:[#allocation23 + $0x38] sm:$0xff]
        %v1570 = vld [vmem:[#allocation23 + $0x40] sm:$0xff]
        %v1571 = vld [vmem:[#allocation23 + $0x48] sm:$0xff]
        %v1572 = vld [vmem:[#allocation23 + $0x50] sm:$0xff]
        %v1573 = vld [vmem:[#allocation23 + $0x58] sm:$0xff]
        %v1574 = vld [vmem:[#allocation23 + $0x60] sm:$0xff]
        %v1575 = vld [vmem:[#allocation23 + $0x68] sm:$0xff]
        %v1576 = vld [vmem:[#allocation23 + $0x70] sm:$0xff]
        %v1577 = vld [vmem:[#allocation23 + $0x78] sm:$0xff]
        %v1578 = vld [vmem:[#allocation25] sm:$0x3]
        %v1579 = vpack.c.bf16 %v1525, %v1525
        %v1596 = vunpack.c.l.b16 %v1546
        %v1597 = vunpack.c.h.b16 %v1546
        %v1598 = vunpack.c.l.b16 %v1547
        %v1599 = vunpack.c.h.b16 %v1547
        %v1600 = vunpack.c.l.b16 %v1548
        %v1601 = vunpack.c.h.b16 %v1548
        %v1602 = vunpack.c.l.b16 %v1549
        %v1603 = vunpack.c.h.b16 %v1549
        %v1604 = vunpack.c.l.b16 %v1550
        %v1605 = vunpack.c.h.b16 %v1550
        %v1606 = vunpack.c.l.b16 %v1551
        %v1607 = vunpack.c.h.b16 %v1551
        %v1608 = vunpack.c.l.b16 %v1552
        %v1609 = vunpack.c.h.b16 %v1552
        %v1610 = vunpack.c.l.b16 %v1553
        %v1611 = vunpack.c.h.b16 %v1553
        %v1612 = vunpack.c.l.b16 %v1554
        %v1613 = vunpack.c.h.b16 %v1554
        %v1614 = vunpack.c.l.b16 %v1555
        %v1615 = vunpack.c.h.b16 %v1555
        %v1616 = vunpack.c.l.b16 %v1556
        %v1617 = vunpack.c.h.b16 %v1556
        %v1618 = vunpack.c.l.b16 %v1557
        %v1619 = vunpack.c.h.b16 %v1557
        %v1620 = vunpack.c.l.b16 %v1558
        %v1621 = vunpack.c.h.b16 %v1558
        %v1622 = vunpack.c.l.b16 %v1559
        %v1623 = vunpack.c.h.b16 %v1559
        %v1624 = vunpack.c.l.b16 %v1560
        %v1625 = vunpack.c.h.b16 %v1560
        %v1626 = vunpack.c.l.b16 %v1561
        %v1627 = vunpack.c.h.b16 %v1561
        %v1628 = vpack.c.b16 %v1598, %v1596
        %v1629 = vpack.c.b16 %v1599, %v1597
        %v1630 = vpack.c.b16 %v1602, %v1600
        %v1631 = vpack.c.b16 %v1603, %v1601
        %v1632 = vpack.c.b16 %v1606, %v1604
        %v1633 = vpack.c.b16 %v1607, %v1605
        %v1634 = vpack.c.b16 %v1610, %v1608
        %v1635 = vpack.c.b16 %v1611, %v1609
        %v1636 = vpack.c.b16 %v1614, %v1612
        %v1637 = vpack.c.b16 %v1615, %v1613
        %v1638 = vpack.c.b16 %v1618, %v1616
        %v1639 = vpack.c.b16 %v1619, %v1617
        %v1640 = vpack.c.b16 %v1622, %v1620
        %v1641 = vpack.c.b16 %v1623, %v1621
        %v1642 = vpack.c.b16 %v1626, %v1624
        %v1643 = vpack.c.b16 %v1627, %v1625
        %1660 = vmatprep.subr.bf16.mxu0 %v1629
        %1661 = vmatpush1.bf16.msra.mxu0 %v1628
        %1662 = vmatprep.subr.bf16.mxu0 %v1631
        %1663 = vmatpush1.bf16.msra.mxu0 %v1630
        %1664 = vmatprep.subr.bf16.mxu0 %v1633
        %1665 = vmatpush1.bf16.msra.mxu0 %v1632
        %1666 = vmatprep.subr.bf16.mxu0 %v1635
        %1667 = vmatpush1.bf16.msra.mxu0 %v1634
        %1668 = vmatprep.subr.bf16.mxu0 %v1637
        %1669 = vmatpush1.bf16.msra.mxu0 %v1636
        %1670 = vmatprep.subr.bf16.mxu0 %v1639
        %1671 = vmatpush1.bf16.msra.mxu0 %v1638
        %1672 = vmatprep.subr.bf16.mxu0 %v1641
        %1673 = vmatpush1.bf16.msra.mxu0 %v1640
        %1674 = vmatprep.subr.bf16.mxu0 %v1643
        %1675 = vmatpush1.bf16.msra.mxu0 %v1642
        %1676 = vmatprep.subr.bf16.mxu0 0
        %1677 = vmatpush1.bf16.msra.mxu0 0
        %1678 = vmatprep.subr.bf16.mxu0 0
        %1679 = vmatpush1.bf16.msra.mxu0 0
        %1680 = vmatprep.subr.bf16.mxu0 0
        %1681 = vmatpush1.bf16.msra.mxu0 0
        %1682 = vmatprep.subr.bf16.mxu0 0
        %1683 = vmatpush1.bf16.msra.mxu0 0
        %1684 = vmatprep.subr.bf16.mxu0 0
        %1685 = vmatpush1.bf16.msra.mxu0 0
        %1686 = vmatprep.subr.bf16.mxu0 0
        %1687 = vmatpush1.bf16.msra.mxu0 0
        %1688 = vmatprep.subr.bf16.mxu0 0
        %1689 = vmatpush1.bf16.msra.mxu0 0
        %1690 = vmatprep.subr.bf16.mxu0 0
        %1691 = vmatpush1.bf16.msra.mxu0 0
        %1692 = vmatprep.mubr.bf16.mxu0 0
        %1693 = vmatmul.mubr.bf16.gmra.mrb[0].mxu0 %v1579
        %v1694 = vpop.f32.mrb[0].mxu0
        %v1695 = vadd.f32 0.0, %v1694
        %v1696 = vpop.f32.mrb[0].mxu0
        %v1697 = vadd.f32 0.0, %v1696
        %v1698 = vpop.f32.mrb[0].mxu0
        %v1699 = vpop.f32.mrb[0].mxu0
        %1700 = vdwg.mxu0
        %v1717 = vunpack.c.l.b16 %v1530
        %v1718 = vunpack.c.h.b16 %v1530
        %v1719 = vunpack.c.l.b16 %v1531
        %v1720 = vunpack.c.h.b16 %v1531
        %v1721 = vunpack.c.l.b16 %v1532
        %v1722 = vunpack.c.h.b16 %v1532
        %v1723 = vunpack.c.l.b16 %v1533
        %v1724 = vunpack.c.h.b16 %v1533
        %v1725 = vunpack.c.l.b16 %v1534
        %v1726 = vunpack.c.h.b16 %v1534
        %v1727 = vunpack.c.l.b16 %v1535
        %v1728 = vunpack.c.h.b16 %v1535
        %v1729 = vunpack.c.l.b16 %v1536
        %v1730 = vunpack.c.h.b16 %v1536
        %v1731 = vunpack.c.l.b16 %v1537
        %v1732 = vunpack.c.h.b16 %v1537
        %v1733 = vunpack.c.l.b16 %v1538
        %v1734 = vunpack.c.h.b16 %v1538
        %v1735 = vunpack.c.l.b16 %v1539
        %v1736 = vunpack.c.h.b16 %v1539
        %v1737 = vunpack.c.l.b16 %v1540
        %v1738 = vunpack.c.h.b16 %v1540
        %v1739 = vunpack.c.l.b16 %v1541
        %v1740 = vunpack.c.h.b16 %v1541
        %v1741 = vunpack.c.l.b16 %v1542
        %v1742 = vunpack.c.h.b16 %v1542
        %v1743 = vunpack.c.l.b16 %v1543
        %v1744 = vunpack.c.h.b16 %v1543
        %v1745 = vunpack.c.l.b16 %v1544
        %v1746 = vunpack.c.h.b16 %v1544
        %v1747 = vunpack.c.l.b16 %v1545
        %v1748 = vunpack.c.h.b16 %v1545
        %v1749 = vpack.c.b16 %v1719, %v1717
        %v1750 = vpack.c.b16 %v1720, %v1718
        %v1751 = vpack.c.b16 %v1723, %v1721
        %v1752 = vpack.c.b16 %v1724, %v1722
        %v1753 = vpack.c.b16 %v1727, %v1725
        %v1754 = vpack.c.b16 %v1728, %v1726
        %v1755 = vpack.c.b16 %v1731, %v1729
        %v1756 = vpack.c.b16 %v1732, %v1730
        %v1757 = vpack.c.b16 %v1735, %v1733
        %v1758 = vpack.c.b16 %v1736, %v1734
        %v1759 = vpack.c.b16 %v1739, %v1737
        %v1760 = vpack.c.b16 %v1740, %v1738
        %v1761 = vpack.c.b16 %v1743, %v1741
        %v1762 = vpack.c.b16 %v1744, %v1742
        %v1763 = vpack.c.b16 %v1747, %v1745
        %v1764 = vpack.c.b16 %v1748, %v1746
        %1781 = vmatprep.subr.bf16.mxu0 %v1750
        %1782 = vmatpush1.bf16.msra.mxu0 %v1749
        %1783 = vmatprep.subr.bf16.mxu0 %v1752
        %1784 = vmatpush1.bf16.msra.mxu0 %v1751
        %1785 = vmatprep.subr.bf16.mxu0 %v1754
        %1786 = vmatpush1.bf16.msra.mxu0 %v1753
        %1787 = vmatprep.subr.bf16.mxu0 %v1756
        %1788 = vmatpush1.bf16.msra.mxu0 %v1755
        %1789 = vmatprep.subr.bf16.mxu0 %v1758
        %1790 = vmatpush1.bf16.msra.mxu0 %v1757
        %1791 = vmatprep.subr.bf16.mxu0 %v1760
        %1792 = vmatpush1.bf16.msra.mxu0 %v1759
        %1793 = vmatprep.subr.bf16.mxu0 %v1762
        %1794 = vmatpush1.bf16.msra.mxu0 %v1761
        %1795 = vmatprep.subr.bf16.mxu0 %v1764
        %1796 = vmatpush1.bf16.msra.mxu0 %v1763
        %1797 = vmatprep.subr.bf16.mxu0 0
        %1798 = vmatpush1.bf16.msra.mxu0 0
        %1799 = vmatprep.subr.bf16.mxu0 0
        %1800 = vmatpush1.bf16.msra.mxu0 0
        %1801 = vmatprep.subr.bf16.mxu0 0
        %1802 = vmatpush1.bf16.msra.mxu0 0
        %1803 = vmatprep.subr.bf16.mxu0 0
        %1804 = vmatpush1.bf16.msra.mxu0 0
        %1805 = vmatprep.subr.bf16.mxu0 0
        %1806 = vmatpush1.bf16.msra.mxu0 0
        %1807 = vmatprep.subr.bf16.mxu0 0
        %1808 = vmatpush1.bf16.msra.mxu0 0
        %1809 = vmatprep.subr.bf16.mxu0 0
        %1810 = vmatpush1.bf16.msra.mxu0 0
        %1811 = vmatprep.subr.bf16.mxu0 0
        %1812 = vmatpush1.bf16.msra.mxu0 0
        %1813 = vmatprep.mubr.bf16.mxu0 0
        %1814 = vmatmul.mubr.bf16.gmra.mrb[0].mxu0 %v814
        %v1815 = vpop.f32.mrb[0].mxu0
        %v1816 = vadd.f32 %v1695, %v1815
        %v1817 = vpop.f32.mrb[0].mxu0
        %v1818 = vadd.f32 %v1697, %v1817
        %v1819 = vpop.f32.mrb[0].mxu0
        %v1820 = vpop.f32.mrb[0].mxu0
        %1821 = vdwg.mxu0
        %v1822 = vmul.f32 %v805, %v1525
        %v1823 = vpack.c.bf16 %v1822, %v1822
        %v1840 = vunpack.c.l.b16 %v1562
        %v1841 = vunpack.c.h.b16 %v1562
        %v1842 = vunpack.c.l.b16 %v1563
        %v1843 = vunpack.c.h.b16 %v1563
        %v1844 = vunpack.c.l.b16 %v1564
        %v1845 = vunpack.c.h.b16 %v1564
        %v1846 = vunpack.c.l.b16 %v1565
        %v1847 = vunpack.c.h.b16 %v1565
        %v1848 = vunpack.c.l.b16 %v1566
        %v1849 = vunpack.c.h.b16 %v1566
        %v1850 = vunpack.c.l.b16 %v1567
        %v1851 = vunpack.c.h.b16 %v1567
        %v1852 = vunpack.c.l.b16 %v1568
        %v1853 = vunpack.c.h.b16 %v1568
        %v1854 = vunpack.c.l.b16 %v1569
        %v1855 = vunpack.c.h.b16 %v1569
        %v1856 = vunpack.c.l.b16 %v1570
        %v1857 = vunpack.c.h.b16 %v1570
        %v1858 = vunpack.c.l.b16 %v1571
        %v1859 = vunpack.c.h.b16 %v1571
        %v1860 = vunpack.c.l.b16 %v1572
        %v1861 = vunpack.c.h.b16 %v1572
        %v1862 = vunpack.c.l.b16 %v1573
        %v1863 = vunpack.c.h.b16 %v1573
        %v1864 = vunpack.c.l.b16 %v1574
        %v1865 = vunpack.c.h.b16 %v1574
        %v1866 = vunpack.c.l.b16 %v1575
        %v1867 = vunpack.c.h.b16 %v1575
        %v1868 = vunpack.c.l.b16 %v1576
        %v1869 = vunpack.c.h.b16 %v1576
        %v1870 = vunpack.c.l.b16 %v1577
        %v1871 = vunpack.c.h.b16 %v1577
        %v1872 = vpack.c.b16 %v1842, %v1840
        %v1873 = vpack.c.b16 %v1843, %v1841
        %v1874 = vpack.c.b16 %v1846, %v1844
        %v1875 = vpack.c.b16 %v1847, %v1845
        %v1876 = vpack.c.b16 %v1850, %v1848
        %v1877 = vpack.c.b16 %v1851, %v1849
        %v1878 = vpack.c.b16 %v1854, %v1852
        %v1879 = vpack.c.b16 %v1855, %v1853
        %v1880 = vpack.c.b16 %v1858, %v1856
        %v1881 = vpack.c.b16 %v1859, %v1857
        %v1882 = vpack.c.b16 %v1862, %v1860
        %v1883 = vpack.c.b16 %v1863, %v1861
        %v1884 = vpack.c.b16 %v1866, %v1864
        %v1885 = vpack.c.b16 %v1867, %v1865
        %v1886 = vpack.c.b16 %v1870, %v1868
        %v1887 = vpack.c.b16 %v1871, %v1869
        %1904 = vmatprep.subr.bf16.mxu0 %v1873
        %1905 = vmatpush1.bf16.msra.mxu0 %v1872
        %1906 = vmatprep.subr.bf16.mxu0 %v1875
        %1907 = vmatpush1.bf16.msra.mxu0 %v1874
        %1908 = vmatprep.subr.bf16.mxu0 %v1877
        %1909 = vmatpush1.bf16.msra.mxu0 %v1876
        %1910 = vmatprep.subr.bf16.mxu0 %v1879
        %1911 = vmatpush1.bf16.msra.mxu0 %v1878
        %1912 = vmatprep.subr.bf16.mxu0 %v1881
        %1913 = vmatpush1.bf16.msra.mxu0 %v1880
        %1914 = vmatprep.subr.bf16.mxu0 %v1883
        %1915 = vmatpush1.bf16.msra.mxu0 %v1882
        %1916 = vmatprep.subr.bf16.mxu0 %v1885
        %1917 = vmatpush1.bf16.msra.mxu0 %v1884
        %1918 = vmatprep.subr.bf16.mxu0 %v1887
        %1919 = vmatpush1.bf16.msra.mxu0 %v1886
        %1920 = vmatprep.subr.bf16.mxu0 0
        %1921 = vmatpush1.bf16.msra.mxu0 0
        %1922 = vmatprep.subr.bf16.mxu0 0
        %1923 = vmatpush1.bf16.msra.mxu0 0
        %1924 = vmatprep.subr.bf16.mxu0 0
        %1925 = vmatpush1.bf16.msra.mxu0 0
        %1926 = vmatprep.subr.bf16.mxu0 0
        %1927 = vmatpush1.bf16.msra.mxu0 0
        %1928 = vmatprep.subr.bf16.mxu0 0
        %1929 = vmatpush1.bf16.msra.mxu0 0
        %1930 = vmatprep.subr.bf16.mxu0 0
        %1931 = vmatpush1.bf16.msra.mxu0 0
        %1932 = vmatprep.subr.bf16.mxu0 0
        %1933 = vmatpush1.bf16.msra.mxu0 0
        %1934 = vmatprep.subr.bf16.mxu0 0
        %1935 = vmatpush1.bf16.msra.mxu0 0
        %1936 = vmatprep.mubr.bf16.mxu0 0
        %1937 = vmatmul.mubr.bf16.gmra.mrb[0].mxu0 %v1823
        %v1938 = vpop.f32.mrb[0].mxu0
        %v1939 = vadd.f32 0.0, %v1938
        %v1940 = vpop.f32.mrb[0].mxu0
        %v1941 = vadd.f32 0.0, %v1940
        %v1942 = vpop.f32.mrb[0].mxu0
        %v1943 = vpop.f32.mrb[0].mxu0
        %1944 = vdwg.mxu0
        %v1945 = vadd.f32 %v1816, %v1939
        %v1946 = vadd.f32 %v1818, %v1941
        %v1948 = vlaneseq
        %v1949 = vshrl.u32 %v1948, 7
        %v1950 = vsub.s32 0, %v1949
        %v1951 = vrot.slane %v1578, %v1950
        %v1952 = vlaneseq
        %v1953 = vshrl.u32 %v1952, 7
        %v1954 = vsub.s32 1, %v1953
        %v1955 = vrot.slane %v1578, %v1954
        %v1958 = vadd.f32 %v1945, %v1951
        %v1959 = vadd.f32 %v1946, %v1955
        %v1960 = vtanh.pop %v1958
        %v1961 = vxor.u32 %v1959, 2147483648
        %v1962 = vmul.f32 %v1961, 1.442695
        %v1963 = vpow.pop %v1962
        %v1964 = vadd.f32 %v1963, 1.0
        %v1965 = vrcp.pop %v1964
        %v1966 = vmul.f32 1.0, %v1965
        %v1967 = vmul.f32 %v1966, %v1960
        %v1968 = vsub.f32 1.0, %v1966
        %v1969 = vmul.f32 %v1968, %v805
        %v1970 = vadd.f32 %v1967, %v1969
        %1971 = vst [vmem:[%s801] sm:$0xff] %v1970
        %s1972 = sand.u32 %s391, 1
        %s1973 = scalar_lea.sflag [#allocation4], %s1972
        %s1974 = sand.u32 %s391, 1
        %s1975 = smul.addr %s1974, 16
        %s1976 = scalar_lea.vmem [#allocation26], %s1975
        %s1977 = sand.u32 %s417, 1
        %s1978 = scalar_lea.sflag [#allocation28], %s1977
        %s1979 = sand.u32 %s417, 1
        %s1980 = smul.addr %s1979, 8
        %s1981 = scalar_lea.vmem [#allocation27], %s1980
        // Predicated region
        $region141: #{tpu_custom_call.1} parent=79 // pred_check
          %p1982 = pneg %p401
        $region142: #{tpu_custom_call.1} parent=79 // pred_check_branch
          %1984 = sbr.rel (%p1982) target = $region144
        $region143: #{tpu_custom_call.1} parent=79 // pred_region
          %s1986 = ssub.s32 256, 256
          %1987 = vsyncadd %s1973, %s1986
          %s1988 = smul.addr %s48, 2
          %s1989 = smul.addr %s1988, 128
          %s1990 = scalar_lea.hbm %s15, %s1989
          %s1991 = sshll.u32 %s1976, 4
          %s1992 = int_to_ptr.vmem [resolvable:$true] %s1991
          %1997 = dma.vmem_to_hbm [thread:$0]  %s1992, 256, %s1990, %s1973, 128, 128, 8
        $region144: #{tpu_custom_call.1} parent=79 // pred_fallthru
          _
        // Predicated region
        $region145: #{tpu_custom_call.1} parent=79 // pred_check
          %p1998 = pneg %p427
        $region146: #{tpu_custom_call.1} parent=79 // pred_check_branch
          %2000 = sbr.rel (%p1998) target = $region148
        $region147: #{tpu_custom_call.1} parent=79 // pred_region
          %s2002 = ssub.s32 128, 128
          %2003 = vsyncadd %s1978, %s2002
          %s2004 = smul.addr %s48, 128
          %s2005 = scalar_lea.hbm %s16, %s2004
          %s2007 = sshll.u32 %s1981, 4
          %s2008 = int_to_ptr.vmem [resolvable:$true] %s2007
          %2010 = dma.vmem_to_hbm [thread:$0]  %s2008, 128, %s2005, %s1978
        $region148: #{tpu_custom_call.1} parent=79 // pred_fallthru
          _
      $region80: #{tpu_custom_call.1} parent=5 // pred_fallthru
        _
      %p2011 = scmp.le.s32.totalorder 2, %s43
      // Predicated region
      $region149: #{tpu_custom_call.1} parent=5 // pred_check
        %p2012 = pneg %p2011
      $region150: #{tpu_custom_call.1} parent=5 // pred_check_branch
        %2014 = sbr.rel (%p2012) target = $region152
      $region151: #{tpu_custom_call.1} parent=5 // pred_region
        %s2015 = ssub.s32 %s43, 2
        // Predicated region
        $region153: #{tpu_custom_call.1} parent=151 // pred_check
          %p2016 = pneg %p407
        $region154: #{tpu_custom_call.1} parent=151 // pred_check_branch
          %2018 = sbr.rel (%p2016) target = $region156
        $region155: #{tpu_custom_call.1} parent=151 // pred_region
          %s2019 = sand.u32 %s392, 1
          %s2020 = scalar_lea.sflag [#allocation4], %s2019
          %s2021 = sand.u32 %s392, 1
          %s2022 = smul.addr %s2021, 16
          %s2023 = scalar_lea.vmem [#allocation26], %s2022
          %2024 = dma.done %s2020, 256
        $region156: #{tpu_custom_call.1} parent=151 // pred_fallthru
          _
        // Predicated region
        $region157: #{tpu_custom_call.1} parent=151 // pred_check
          %p2025 = pneg %p433
        $region158: #{tpu_custom_call.1} parent=151 // pred_check_branch
          %2027 = sbr.rel (%p2025) target = $region160
        $region159: #{tpu_custom_call.1} parent=151 // pred_region
          %s2028 = sand.u32 %s418, 1
          %s2029 = scalar_lea.sflag [#allocation28], %s2028
          %s2030 = sand.u32 %s418, 1
          %s2031 = smul.addr %s2030, 8
          %s2032 = scalar_lea.vmem [#allocation27], %s2031
          %2033 = dma.done %s2029, 128
        $region160: #{tpu_custom_call.1} parent=151 // pred_fallthru
          _
      $region152: #{tpu_custom_call.1} parent=5 // pred_fallthru
        _
    $region6: #{tpu_custom_call.1} parent=1 // loop_footer
      %s47 = sadd.s32 1, %s43
    $region7: #{tpu_custom_call.1} parent=1 // loop_footer_branch
      %42 = sbr.rel target = $region3
    $region8: #{tpu_custom_call.1} parent=1 // loop_exit
      _
    %2034 = vsyncpa [#allocation3], 1
    %s2035 = scalar_lea.sflag [#allocation3], 1
    %2036 = vsyncpa %s2035, 1
    %2037 = vsyncpa [#allocation6], 1
    %s2038 = scalar_lea.sflag [#allocation6], 1
    %2039 = vsyncpa %s2038, 1
    %2040 = vsyncpa [#allocation9], 1
    %s2041 = scalar_lea.sflag [#allocation9], 1
    %2042 = vsyncpa %s2041, 1
    %2043 = vsyncpa [#allocation12], 1
    %2044 = vsyncpa [#allocation15], 1
    %2045 = vsyncpa [#allocation18], 1
    %2046 = vsyncpa [#allocation21], 1
    %2047 = vsyncpa [#allocation24], 1
    %2048 = vsyncpa [#allocation4], 1
    %s2049 = scalar_lea.sflag [#allocation4], 1
    %2050 = vsyncpa %s2049, 1
    %2051 = vsyncpa [#allocation28], 1
    %s2052 = scalar_lea.sflag [#allocation28], 1
    %2053 = vsyncpa %s2052, 1

</llo_original>
